<compile_context>
chip_gen: v7x
topology: tpu7x:2x2x1
jax: 0.10.0
libtpu: 0.0.40
codegen_flags: <defaults>
</compile_context>

<pallas_src>
import functools

import jax
import jax.numpy as jnp
from jax.experimental import pallas as pl
from jax.experimental.pallas import tpu as pltpu

NUM_STEPS = 1
STEP_SIZE = 1e-3
EPSILON   = 1e-6
NOISE_VAR = 1e-5

_COMPILER_PARAMS = pltpu.CompilerParams(
    dimension_semantics=("parallel",),      # independent M tiles -> both TCs on v7x
    vmem_limit_bytes=48 * 1024 * 1024,      # safe on v7x (64 MiB phys), plenty on v5e/v6e
)

_SMEM_SPEC = pl.BlockSpec(memory_space=pltpu.MemorySpace.SMEM)


def _cdiv(a, b):
    return (a + b - 1) // b


def _round_up(x, m):
    return _cdiv(x, m) * m


def _choose_tile_m(m, h, c):
    # Per-row double-buffered working set of the stats pass is ~8H + 24C bytes
    # (bf16 embed+noise in, f32 targ in, f32 diff+nW out, x2 pipeline buffers).
    # Target ~24 MiB total -> rows ~= 3 MiB / (H + 3C); multiple of 16 for bf16
    # sublane packing, capped at 2048 rows.
    rows = (3 * 1024 * 1024) // max(h + 3 * c, 1)
    rows = max(16, min(2048, (rows // 16) * 16))
    # Keep >= 2 grid steps so dimension_semantics=("parallel",) can shard across
    # v7x's two TensorCores.
    rows = min(rows, max(16, _round_up(_cdiv(m, 2), 16)))
    return min(rows, _round_up(m, 16))


# ---------------------------------------------------------------------------
# Kernels
# ---------------------------------------------------------------------------

def _stats_kernel(scal_ref, embed_ref, noise_ref, w_ref, wt_ref, b_ref, targ_ref,
                  stats_ref, diff_ref, nw_ref):
    """Per tile: diff, nW = noise@W, and the norm partials gg/nn/ng (lane-dense)."""
    pend = scal_ref[0]                              # deferred clip scale of the noise buffer
    noise_bf = noise_ref[...]                       # bf16 [tile, H]
    w = w_ref[...]                                  # bf16 [H, C]

    e_w = jnp.dot(embed_ref[...], w, preferred_element_type=jnp.float32)     # f32 [tile,C]
    nb_w = jnp.dot(noise_bf, w, preferred_element_type=jnp.float32)          # f32 [tile,C]
    n_w = pend * nb_w                               # (pend*noise) @ W
    diff = e_w + n_w + b_ref[...] - targ_ref[...]   # f32 [tile, C]
    # Unscaled MSE gradient w.r.t. the noise: diff @ W^T (2/N folded into wrapper scalars).
    grad_u = jnp.dot(diff.astype(jnp.bfloat16), wt_ref[...],
                     preferred_element_type=jnp.float32)                     # f32 [tile,H]

    diff_ref[...] = diff
    nw_ref[...] = n_w

    noise_f = noise_bf.astype(jnp.float32)
    gg = jnp.sum(grad_u * grad_u, keepdims=True)                    # (1,1)
    nn = (pend * pend) * jnp.sum(noise_f * noise_f, keepdims=True)  # (1,1)
    ng = pend * jnp.sum(noise_f * grad_u, keepdims=True)            # (1,1)

    lane = jax.lax.broadcasted_iota(jnp.int32, (1, 128), 1)
    stats = (jnp.where(lane == 0, gg, 0.0)
             + jnp.where(lane == 1, nn, 0.0)
             + jnp.where(lane == 2, ng, 0.0))
    stats_ref[...] = jnp.reshape(stats, (1, 1, 128))


def _update_kernel(scal_ref, noise_ref, diff_ref, wt_ref, out_ref):
    """noise_new (pre-clip) = pend*noise + f_u * (diff @ W^T); clip deferred via pend."""
    pend = scal_ref[0]
    f_u = scal_ref[1]
    grad_u = jnp.dot(diff_ref[...].astype(jnp.bfloat16), wt_ref[...],
                     preferred_element_type=jnp.float32)             # f32 [tile,H]
    new_noise = pend * noise_ref[...].astype(jnp.float32) + f_u * grad_u
    out_ref[...] = new_noise.astype(jnp.bfloat16)


def _loss_kernel(scal_ref, diff_ref, nw_ref, g_ref, dd_ref):
    """Final adversarial residual from carried [tile,C] residuals + Gram matrix."""
    f_u = scal_ref[1]
    clip = scal_ref[2]
    diff = diff_ref[...]                                             # f32 [tile,C]
    # noise_final @ W = clip*(noise@W) + clip*f_u*(diff @ W^T @ W)
    d_g = jnp.dot(diff, g_ref[...], preferred_element_type=jnp.float32)   # f32 [tile,C]
    diff_new = diff + (clip - 1.0) * nw_ref[...] + (clip * f_u) * d_g
    dd = jnp.sum(diff_new * diff_new, keepdims=True)                 # (1,1)
    lane = jax.lax.broadcasted_iota(jnp.int32, (1, 128), 1)
    dd_ref[...] = jnp.reshape(jnp.where(lane == 0, dd, 0.0), (1, 1, 128))


# ---------------------------------------------------------------------------
# pallas_call wrappers
# ---------------------------------------------------------------------------

def _stats_pass(scal, embed_bf, noise_bf, w_bf, wt_bf, b2d, targ_f, tile_m):
    m_pad, h = noise_bf.shape
    c = w_bf.shape[1]
    t = m_pad // tile_m
    return pl.pallas_call(
        _stats_kernel,
        grid=(t,),
        in_specs=[
            _SMEM_SPEC,                                         # scalars (3,) [pend, f_u, clip]
            pl.BlockSpec((tile_m, h), lambda i: (i, 0)),        # embed bf16
            pl.BlockSpec((tile_m, h), lambda i: (i, 0)),        # noise bf16
            pl.BlockSpec((h, c), lambda i: (0, 0)),             # W bf16 (resident)
            pl.BlockSpec((c, h), lambda i: (0, 0)),             # W^T bf16 (resident)
            pl.BlockSpec((1, c), lambda i: (0, 0)),             # b f32 (resident)
            pl.BlockSpec((tile_m, c), lambda i: (i, 0)),        # targ f32
        ],
        out_specs=[
            pl.BlockSpec((1, 1, 128), lambda i: (i, 0, 0)),     # gg/nn/ng partials
            pl.BlockSpec((tile_m, c), lambda i: (i, 0)),        # diff residual
            pl.BlockSpec((tile_m, c), lambda i: (i, 0)),        # noise@W residual
        ],
        out_shape=(
            jax.ShapeDtypeStruct((t, 1, 128), jnp.float32),
            jax.ShapeDtypeStruct((m_pad, c), jnp.float32),
            jax.ShapeDtypeStruct((m_pad, c), jnp.float32),
        ),
        compiler_params=_COMPILER_PARAMS,
    )(scal, embed_bf, noise_bf, w_bf, wt_bf, b2d, targ_f)


def _update_pass(scal, noise_bf, diff, wt_bf, tile_m):
    m_pad, h = noise_bf.shape
    c = diff.shape[1]
    t = m_pad // tile_m
    return pl.pallas_call(
        _update_kernel,
        grid=(t,),
        in_specs=[
            _SMEM_SPEC,
            pl.BlockSpec((tile_m, h), lambda i: (i, 0)),        # noise bf16
            pl.BlockSpec((tile_m, c), lambda i: (i, 0)),        # diff f32
            pl.BlockSpec((c, h), lambda i: (0, 0)),             # W^T bf16 (resident)
        ],
        out_specs=pl.BlockSpec((tile_m, h), lambda i: (i, 0)),
        out_shape=jax.ShapeDtypeStruct((m_pad, h), jnp.bfloat16),
        compiler_params=_COMPILER_PARAMS,
    )(scal, noise_bf, diff, wt_bf)


def _loss_pass(scal, diff, n_w, g_f, tile_m):
    m_pad, c = diff.shape
    t = m_pad // tile_m
    return pl.pallas_call(
        _loss_kernel,
        grid=(t,),
        in_specs=[
            _SMEM_SPEC,
            pl.BlockSpec((tile_m, c), lambda i: (i, 0)),        # diff residual
            pl.BlockSpec((tile_m, c), lambda i: (i, 0)),        # noise@W residual
            pl.BlockSpec((c, c), lambda i: (0, 0)),             # G = W^T W (resident)
        ],
        out_specs=pl.BlockSpec((1, 1, 128), lambda i: (i, 0, 0)),
        out_shape=jax.ShapeDtypeStruct((t, 1, 128), jnp.float32),
        compiler_params=_COMPILER_PARAMS,
    )(scal, diff, n_w, g_f)


# ---------------------------------------------------------------------------
# Public wrapper (forward semantics of SMARTLoss with linear eval_fn + MSE loss_fn)
# ---------------------------------------------------------------------------

def smart_loss(embed, noise0, w, b, targ, *, num_steps=NUM_STEPS,
               step_size=STEP_SIZE, epsilon=EPSILON, tile_m=None):
    """embed/noise0: [B,S,H]; w: [H,C]; b: [C]; targ: [B,S,C] -> scalar SMART loss."""
    assert num_steps >= 1
    B, S, H = embed.shape
    C = w.shape[1]
    M = B * S
    n_elems = float(M * C)
    coef = 2.0 / n_elems                     # dL/dpred scale of the MSE loss

    if tile_m is None:
        tile_m = _choose_tile_m(M, H, C)
    m_pad = _round_up(M, tile_m)
    pad = m_pad - M

    # bf16 storage for the wide [M,H] streams; cast directly, pad after the cast.
    embed_bf = embed.reshape(M, H).astype(jnp.bfloat16)
    noise_bf = noise0.reshape(M, H).astype(jnp.bfloat16)
    targ_f = targ.reshape(M, C).astype(jnp.float32)
    b2d = b.reshape(1, C).astype(jnp.float32)
    if pad:
        # Padded rows: embed = noise = 0 and targ = b => diff = nW = grad = 0,
        # so they contribute exactly zero to every reduction (no masking needed).
        embed_bf = jnp.pad(embed_bf, ((0, pad), (0, 0)))
        noise_bf = jnp.pad(noise_bf, ((0, pad), (0, 0)))
        targ_f = jnp.concatenate([targ_f, jnp.broadcast_to(b2d, (pad, C))], axis=0)

    w_f = w.astype(jnp.float32)
    w_bf = w_f.astype(jnp.bfloat16)
    wt_bf = w_f.T.astype(jnp.bfloat16)
    g_f = jnp.dot(w_f.T, w_f)                # [C, C] Gram matrix for the loss pass

    # true_noise = pend * noise_buf  (pend carries a deferred clip scale)
    pend = jnp.float32(1.0)
    f_u = jnp.float32(0.0)     # step factor applied to the *unscaled* grad (includes 2/N)
    clip = jnp.float32(1.0)
    noise_buf = noise_bf
    diff = n_w = None

    for s in range(num_steps):
        scal = jnp.stack([pend, f_u, clip]).astype(jnp.float32)
        stats, diff, n_w = _stats_pass(scal, embed_bf, noise_buf, w_bf, wt_bf,
                                       b2d, targ_f, tile_m)
        sums = jnp.sum(stats, axis=(0, 1))   # [128]; lanes 0..2 hold gg/nn/ng
        s_gg, s_nn, s_ng = sums[0], sums[1], sums[2]

        gnorm = coef * jnp.sqrt(s_gg)                              # ||dL/dnoise||_F
        ok = jnp.logical_and(gnorm != 0.0, jnp.logical_not(jnp.isnan(gnorm)))
        factor = jnp.where(ok, step_size / (gnorm + epsilon), 0.0)
        f_u = (factor * coef).astype(jnp.float32)

        # ||noise + factor*grad|| from the quadratic expansion (no extra pass).
        nnorm = jnp.sqrt(s_nn + 2.0 * f_u * s_ng + f_u * f_u * s_gg)
        clip = jnp.where(nnorm > step_size, step_size / nnorm, 1.0).astype(jnp.float32)

        if s < num_steps - 1:
            scal = jnp.stack([pend, f_u, clip]).astype(jnp.float32)
            noise_buf = _update_pass(scal, noise_buf, diff, wt_bf, tile_m)
            pend = clip                      # defer the clip into the next pass

    # Final adversarial loss computed purely from the carried [M,C] residuals.
    scal = jnp.stack([pend, f_u, clip]).astype(jnp.float32)
    p_dd = _loss_pass(scal, diff, n_w, g_f, tile_m)
    return jnp.sum(p_dd) / n_elems


# ---------------------------------------------------------------------------
# Pure-JAX reference (float32) for a sanity check
# ---------------------------------------------------------------------------

def _smart_loss_ref(embed, noise0, w, b, targ, *, num_steps=NUM_STEPS,
                    step_size=STEP_SIZE, epsilon=EPSILON):
    B, S, H = embed.shape
    C = w.shape[1]
    M = B * S
    e = embed.reshape(M, H)
    t = targ.reshape(M, C)
    noise = noise0.reshape(M, H)
    n_el = M * C
    for _ in range(num_steps):
        pred = e @ w + b + noise @ w
        grad = (2.0 / n_el) * (pred - t) @ w.T
        gnorm = jnp.linalg.norm(grad)
        ok = jnp.logical_and(gnorm != 0.0, jnp.logical_not(jnp.isnan(gnorm)))
        noise = jnp.where(ok, noise + step_size * grad / (gnorm + epsilon), noise)
        nnorm = jnp.linalg.norm(noise)
        noise = jnp.where(nnorm > step_size, noise * step_size / nnorm, noise)
    pred = (e + noise) @ w + b
    return jnp.mean((pred - t) ** 2)


if __name__ == "__main__":
    key = jax.random.PRNGKey(0)
    k_embed, k_noise, k_w, k_targ = jax.random.split(key, 4)

    B, S, H, C = 2, 16, 32, 8

    embed = jax.random.normal(k_embed, (B, S, H), dtype=jnp.float32)
    # noise = randn_like(embed) * noise_var  (the initial random perturbation)
    noise0 = jax.random.normal(k_noise, (B, S, H), dtype=jnp.float32) * NOISE_VAR

    # deterministic synthetic eval_fn parameters (linear head H -> C)
    w = jax.random.normal(k_w, (H, C), dtype=jnp.float32) * 0.02
    b = jnp.zeros((C,), dtype=jnp.float32)

    # target "logits" for the MSE loss_fn
    targ = jax.random.normal(k_targ, (B, S, C), dtype=jnp.float32)

    # tile_m=16 -> a 2-tile grid at this small size so the tiled / partial-sum
    # path is actually exercised; leave tile_m=None for the size-adaptive default.
    run = jax.jit(functools.partial(smart_loss, num_steps=NUM_STEPS, tile_m=16))
    loss = run(embed, noise0, w, b, targ)
    jax.block_until_ready(loss)
    assert loss.shape == () and bool(jnp.isfinite(loss))
    ref = _smart_loss_ref(embed, noise0, w, b, targ, num_steps=NUM_STEPS)
    assert abs(float(loss) - float(ref)) <= 0.1 * abs(float(ref)) + 1e-6

    # also exercise the multi-step path (stats + update + loss passes)
    loss2 = jax.jit(functools.partial(smart_loss, num_steps=2, tile_m=16))(
        embed, noise0, w, b, targ)
    jax.block_until_ready(loss2)
    assert bool(jnp.isfinite(loss2))
    ref2 = _smart_loss_ref(embed, noise0, w, b, targ, num_steps=2)
    assert abs(float(loss2) - float(ref2)) <= 0.1 * abs(float(ref2)) + 1e-6

    print("KERNEL_OK")
</pallas_src>

<mosaic_0001>
module attributes {stable_mosaic.version = 11 : i64} {
  func.func @_stats_kernel(%arg0: i32, %arg1: memref<3xf32, #tpu.memory_space<smem>>, %arg2: memref<16x32xbf16, #tpu.memory_space<vmem>>, %arg3: memref<16x32xbf16, #tpu.memory_space<vmem>>, %arg4: memref<32x8xbf16, #tpu.memory_space<vmem>>, %arg5: memref<8x32xbf16, #tpu.memory_space<vmem>>, %arg6: memref<1x8xf32, #tpu.memory_space<vmem>>, %arg7: memref<16x8xf32, #tpu.memory_space<vmem>>, %arg8: memref<1x1x128xf32, #tpu.memory_space<vmem>>, %arg9: memref<16x8xf32, #tpu.memory_space<vmem>>, %arg10: memref<16x8xf32, #tpu.memory_space<vmem>>) attributes {dimension_semantics = [#tpu.dimension_semantics<parallel>], iteration_bounds = array<i64: 2>, scalar_prefetch = 0 : i64, scratch_operands = 0 : i64, tpu.core_type = #tpu.core_type<tc>, window_params = [{transform_indices = @transform_0, window_bounds = array<i64: 3>}, {transform_indices = @transform_1, window_bounds = array<i64: 16, 32>}, {transform_indices = @transform_2, window_bounds = array<i64: 16, 32>}, {pipeline_mode = #tpu.pipeline_mode<synchronous>, transform_indices = @transform_3, window_bounds = array<i64: 32, 8>}, {pipeline_mode = #tpu.pipeline_mode<synchronous>, transform_indices = @transform_4, window_bounds = array<i64: 8, 32>}, {pipeline_mode = #tpu.pipeline_mode<synchronous>, transform_indices = @transform_5, window_bounds = array<i64: 1, 8>}, {transform_indices = @transform_6, window_bounds = array<i64: 16, 8>}, {transform_indices = @transform_7, window_bounds = array<i64: 1, 1, 128>}, {transform_indices = @transform_8, window_bounds = array<i64: 16, 8>}, {transform_indices = @transform_9, window_bounds = array<i64: 16, 8>}]} {
    %c0 = arith.constant 0 : index
    %0 = memref.load %arg1[%c0] : memref<3xf32, #tpu.memory_space<smem>>
    %c0_0 = arith.constant 0 : index
    %c0_1 = arith.constant 0 : index
    %1 = vector.load %arg3[%c0_0, %c0_1] : memref<16x32xbf16, #tpu.memory_space<vmem>>, vector<16x32xbf16>
    %c0_2 = arith.constant 0 : index
    %c0_3 = arith.constant 0 : index
    %2 = vector.load %arg4[%c0_2, %c0_3] : memref<32x8xbf16, #tpu.memory_space<vmem>>, vector<32x8xbf16>
    %c0_4 = arith.constant 0 : index
    %c0_5 = arith.constant 0 : index
    %3 = vector.load %arg2[%c0_4, %c0_5] : memref<16x32xbf16, #tpu.memory_space<vmem>>, vector<16x32xbf16>
    %cst = arith.constant dense<0.000000e+00> : vector<16x8xf32>
    %4 = tpu.matmul %3, %2, %cst {dimension_numbers = #tpu.dot_dimension_numbers<[1], [0], [0], [1], [0, 0, 1, 1], [], []>} : vector<16x32xbf16>, vector<32x8xbf16>, vector<16x8xf32> -> vector<16x8xf32>
    %cst_6 = arith.constant dense<0.000000e+00> : vector<16x8xf32>
    %5 = tpu.matmul %1, %2, %cst_6 {dimension_numbers = #tpu.dot_dimension_numbers<[1], [0], [0], [1], [0, 0, 1, 1], [], []>} : vector<16x32xbf16>, vector<32x8xbf16>, vector<16x8xf32> -> vector<16x8xf32>
    %6 = vector.broadcast %0 : f32 to vector<16x8xf32>
    %7 = arith.mulf %6, %5 : vector<16x8xf32>
    %8 = arith.addf %4, %7 : vector<16x8xf32>
    %c0_7 = arith.constant 0 : index
    %c0_8 = arith.constant 0 : index
    %9 = vector.load %arg6[%c0_7, %c0_8] : memref<1x8xf32, #tpu.memory_space<vmem>>, vector<1x8xf32>
    %10 = vector.broadcast %9 : vector<1x8xf32> to vector<16x8xf32>
    %11 = arith.addf %8, %10 : vector<16x8xf32>
    %c0_9 = arith.constant 0 : index
    %c0_10 = arith.constant 0 : index
    %12 = vector.load %arg7[%c0_9, %c0_10] : memref<16x8xf32, #tpu.memory_space<vmem>>, vector<16x8xf32>
    %13 = arith.subf %11, %12 : vector<16x8xf32>
    %14 = arith.truncf %13 : vector<16x8xf32> to vector<16x8xbf16>
    %c0_11 = arith.constant 0 : index
    %c0_12 = arith.constant 0 : index
    %15 = vector.load %arg5[%c0_11, %c0_12] : memref<8x32xbf16, #tpu.memory_space<vmem>>, vector<8x32xbf16>
    %cst_13 = arith.constant dense<0.000000e+00> : vector<16x32xf32>
    %16 = tpu.matmul %14, %15, %cst_13 {dimension_numbers = #tpu.dot_dimension_numbers<[1], [0], [0], [1], [0, 0, 1, 1], [], []>} : vector<16x8xbf16>, vector<8x32xbf16>, vector<16x32xf32> -> vector<16x32xf32>
    %c0_14 = arith.constant 0 : index
    %c0_15 = arith.constant 0 : index
    %17 = vector.load %arg9[%c0_14, %c0_15] : memref<16x8xf32, #tpu.memory_space<vmem>>, vector<16x8xf32>
    tpu.vector_store %arg9[%c0_14, %c0_15], %13 {strides = array<i32>} : memref<16x8xf32, #tpu.memory_space<vmem>>, vector<16x8xf32>,
    %c0_16 = arith.constant 0 : index
    %c0_17 = arith.constant 0 : index
    %18 = vector.load %arg10[%c0_16, %c0_17] : memref<16x8xf32, #tpu.memory_space<vmem>>, vector<16x8xf32>
    tpu.vector_store %arg10[%c0_16, %c0_17], %7 {strides = array<i32>} : memref<16x8xf32, #tpu.memory_space<vmem>>, vector<16x8xf32>,
    %19 = arith.extf %1 : vector<16x32xbf16> to vector<16x32xf32>
    %20 = arith.mulf %16, %16 : vector<16x32xf32>
    %21 = vector.shape_cast %20 : vector<16x32xf32> to vector<1x16x32xf32>
    %cst_18 = arith.constant dense<0.000000e+00> : vector<1xf32>
    %22 = vector.multi_reduction <add>, %21, %cst_18 [1, 2] : vector<1x16x32xf32> to vector<1xf32>
    %23 = vector.shape_cast %22 : vector<1xf32> to vector<1x1x1xf32>
    %24 = vector.extract %23[0, 0, 0] : f32 from vector<1x1x1xf32>
    %25 = vector.broadcast %24 : f32 to vector<1x1xf32>
    %26 = arith.mulf %0, %0 : f32
    %27 = arith.mulf %19, %19 : vector<16x32xf32>
    %28 = vector.shape_cast %27 : vector<16x32xf32> to vector<1x16x32xf32>
    %cst_19 = arith.constant dense<0.000000e+00> : vector<1xf32>
    %29 = vector.multi_reduction <add>, %28, %cst_19 [1, 2] : vector<1x16x32xf32> to vector<1xf32>
    %30 = vector.shape_cast %29 : vector<1xf32> to vector<1x1x1xf32>
    %31 = vector.extract %30[0, 0, 0] : f32 from vector<1x1x1xf32>
    %32 = vector.broadcast %31 : f32 to vector<1x1xf32>
    %33 = vector.broadcast %26 : f32 to vector<1x1xf32>
    %34 = arith.mulf %33, %32 : vector<1x1xf32>
    %35 = arith.mulf %19, %16 : vector<16x32xf32>
    %36 = vector.shape_cast %35 : vector<16x32xf32> to vector<1x16x32xf32>
    %cst_20 = arith.constant dense<0.000000e+00> : vector<1xf32>
    %37 = vector.multi_reduction <add>, %36, %cst_20 [1, 2] : vector<1x16x32xf32> to vector<1xf32>
    %38 = vector.shape_cast %37 : vector<1xf32> to vector<1x1x1xf32>
    %39 = vector.extract %38[0, 0, 0] : f32 from vector<1x1x1xf32>
    %40 = vector.broadcast %39 : f32 to vector<1x1xf32>
    %41 = vector.broadcast %0 : f32 to vector<1x1xf32>
    %42 = arith.mulf %41, %40 : vector<1x1xf32>
    %43 = tpu.iota {dimensions = array<i32: 1>} : vector<1x128xi32>
    %c0_i32 = arith.constant 0 : i32
    %44 = vector.broadcast %c0_i32 : i32 to vector<1x128xi32>
    %45 = arith.cmpi eq, %43, %44 : vector<1x128xi32>
    %cst_21 = arith.constant 0.000000e+00 : f32
    %46 = vector.shape_cast %25 : vector<1x1xf32> to vector<1x1xf32>
    %47 = vector.broadcast %46 : vector<1x1xf32> to vector<1x128xf32>
    %48 = vector.broadcast %cst_21 : f32 to vector<1x128xf32>
    %49 = arith.select %45, %47, %48 : vector<1x128xi1>, vector<1x128xf32>
    %c1_i32 = arith.constant 1 : i32
    %50 = vector.broadcast %c1_i32 : i32 to vector<1x128xi32>
    %51 = arith.cmpi eq, %43, %50 : vector<1x128xi32>
    %cst_22 = arith.constant 0.000000e+00 : f32
    %52 = vector.shape_cast %34 : vector<1x1xf32> to vector<1x1xf32>
    %53 = vector.broadcast %52 : vector<1x1xf32> to vector<1x128xf32>
    %54 = vector.broadcast %cst_22 : f32 to vector<1x128xf32>
    %55 = arith.select %51, %53, %54 : vector<1x128xi1>, vector<1x128xf32>
    %56 = arith.addf %49, %55 : vector<1x128xf32>
    %c2_i32 = arith.constant 2 : i32
    %57 = vector.broadcast %c2_i32 : i32 to vector<1x128xi32>
    %58 = arith.cmpi eq, %43, %57 : vector<1x128xi32>
    %cst_23 = arith.constant 0.000000e+00 : f32
    %59 = vector.shape_cast %42 : vector<1x1xf32> to vector<1x1xf32>
    %60 = vector.broadcast %59 : vector<1x1xf32> to vector<1x128xf32>
    %61 = vector.broadcast %cst_23 : f32 to vector<1x128xf32>
    %62 = arith.select %58, %60, %61 : vector<1x128xi1>, vector<1x128xf32>
    %63 = arith.addf %56, %62 : vector<1x128xf32>
    %64 = vector.shape_cast %63 : vector<1x128xf32> to vector<1x1x128xf32>
    %c0_24 = arith.constant 0 : index
    %c0_25 = arith.constant 0 : index
    %c0_26 = arith.constant 0 : index
    %65 = vector.load %arg8[%c0_24, %c0_25, %c0_26] : memref<1x1x128xf32, #tpu.memory_space<vmem>>, vector<1x1x128xf32>
    tpu.vector_store %arg8[%c0_24, %c0_25, %c0_26], %64 {strides = array<i32>} : memref<1x1x128xf32, #tpu.memory_space<vmem>>, vector<1x1x128xf32>,
    return
  }
  func.func @transform_0(%arg0: i32) -> i32 {
    %c0_i32 = arith.constant 0 : i32
    %c0_i32_0 = arith.constant 0 : i32
    return %c0_i32 : i32
  }
  func.func @transform_1(%arg0: i32) -> (i32, i32) {
    %c0_i32 = arith.constant 0 : i32
    %c0_i32_0 = arith.constant 0 : i32
    return %arg0, %c0_i32 : i32, i32
  }
  func.func @transform_2(%arg0: i32) -> (i32, i32) {
    %c0_i32 = arith.constant 0 : i32
    %c0_i32_0 = arith.constant 0 : i32
    return %arg0, %c0_i32 : i32, i32
  }
  func.func @transform_3(%arg0: i32) -> (i32, i32) {
    %c0_i32 = arith.constant 0 : i32
    %c0_i32_0 = arith.constant 0 : i32
    %c0_i32_1 = arith.constant 0 : i32
    return %c0_i32, %c0_i32_0 : i32, i32
  }
  func.func @transform_4(%arg0: i32) -> (i32, i32) {
    %c0_i32 = arith.constant 0 : i32
    %c0_i32_0 = arith.constant 0 : i32
    %c0_i32_1 = arith.constant 0 : i32
    return %c0_i32, %c0_i32_0 : i32, i32
  }
  func.func @transform_5(%arg0: i32) -> (i32, i32) {
    %c0_i32 = arith.constant 0 : i32
    %c0_i32_0 = arith.constant 0 : i32
    %c0_i32_1 = arith.constant 0 : i32
    return %c0_i32, %c0_i32_0 : i32, i32
  }
  func.func @transform_6(%arg0: i32) -> (i32, i32) {
    %c0_i32 = arith.constant 0 : i32
    %c0_i32_0 = arith.constant 0 : i32
    return %arg0, %c0_i32 : i32, i32
  }
  func.func @transform_7(%arg0: i32) -> (i32, i32, i32) {
    %c0_i32 = arith.constant 0 : i32
    %c0_i32_0 = arith.constant 0 : i32
    %c0_i32_1 = arith.constant 0 : i32
    return %arg0, %c0_i32, %c0_i32_0 : i32, i32, i32
  }
  func.func @transform_8(%arg0: i32) -> (i32, i32) {
    %c0_i32 = arith.constant 0 : i32
    %c0_i32_0 = arith.constant 0 : i32
    return %arg0, %c0_i32 : i32, i32
  }
  func.func @transform_9(%arg0: i32) -> (i32, i32) {
    %c0_i32 = arith.constant 0 : i32
    %c0_i32_0 = arith.constant 0 : i32
    return %arg0, %c0_i32 : i32, i32
  }
}

module attributes {stable_mosaic.version = 11 : i64} {
  func.func @_loss_kernel(%arg0: i32, %arg1: memref<3xf32, #tpu.memory_space<smem>>, %arg2: memref<16x8xf32, #tpu.memory_space<vmem>>, %arg3: memref<16x8xf32, #tpu.memory_space<vmem>>, %arg4: memref<8x8xf32, #tpu.memory_space<vmem>>, %arg5: memref<1x1x128xf32, #tpu.memory_space<vmem>>) attributes {dimension_semantics = [#tpu.dimension_semantics<parallel>], iteration_bounds = array<i64: 2>, scalar_prefetch = 0 : i64, scratch_operands = 0 : i64, tpu.core_type = #tpu.core_type<tc>, window_params = [{transform_indices = @transform_0, window_bounds = array<i64: 3>}, {transform_indices = @transform_1, window_bounds = array<i64: 16, 8>}, {transform_indices = @transform_2, window_bounds = array<i64: 16, 8>}, {pipeline_mode = #tpu.pipeline_mode<synchronous>, transform_indices = @transform_3, window_bounds = array<i64: 8, 8>}, {transform_indices = @transform_4, window_bounds = array<i64: 1, 1, 128>}]} {
    %c1 = arith.constant 1 : index
    %0 = memref.load %arg1[%c1] : memref<3xf32, #tpu.memory_space<smem>>
    %c2 = arith.constant 2 : index
    %1 = memref.load %arg1[%c2] : memref<3xf32, #tpu.memory_space<smem>>
    %c0 = arith.constant 0 : index
    %c0_0 = arith.constant 0 : index
    %2 = vector.load %arg2[%c0, %c0_0] : memref<16x8xf32, #tpu.memory_space<vmem>>, vector<16x8xf32>
    %c0_1 = arith.constant 0 : index
    %c0_2 = arith.constant 0 : index
    %3 = vector.load %arg4[%c0_1, %c0_2] : memref<8x8xf32, #tpu.memory_space<vmem>>, vector<8x8xf32>
    %cst = arith.constant dense<0.000000e+00> : vector<16x8xf32>
    %4 = tpu.matmul %2, %3, %cst {dimension_numbers = #tpu.dot_dimension_numbers<[1], [0], [0], [1], [0, 0, 1, 1], [], []>} : vector<16x8xf32>, vector<8x8xf32>, vector<16x8xf32> -> vector<16x8xf32>
    %cst_3 = arith.constant 1.000000e+00 : f32
    %5 = arith.subf %1, %cst_3 : f32
    %c0_4 = arith.constant 0 : index
    %c0_5 = arith.constant 0 : index
    %6 = vector.load %arg3[%c0_4, %c0_5] : memref<16x8xf32, #tpu.memory_space<vmem>>, vector<16x8xf32>
    %7 = vector.broadcast %5 : f32 to vector<16x8xf32>
    %8 = arith.mulf %7, %6 : vector<16x8xf32>
    %9 = arith.addf %2, %8 : vector<16x8xf32>
    %10 = arith.mulf %1, %0 : f32
    %11 = vector.broadcast %10 : f32 to vector<16x8xf32>
    %12 = arith.mulf %11, %4 : vector<16x8xf32>
    %13 = arith.addf %9, %12 : vector<16x8xf32>
    %14 = arith.mulf %13, %13 : vector<16x8xf32>
    %15 = vector.shape_cast %14 : vector<16x8xf32> to vector<1x16x8xf32>
    %cst_6 = arith.constant dense<0.000000e+00> : vector<1xf32>
    %16 = vector.multi_reduction <add>, %15, %cst_6 [1, 2] : vector<1x16x8xf32> to vector<1xf32>
    %17 = vector.shape_cast %16 : vector<1xf32> to vector<1x1x1xf32>
    %18 = vector.extract %17[0, 0, 0] : f32 from vector<1x1x1xf32>
    %19 = vector.broadcast %18 : f32 to vector<1x1xf32>
    %20 = tpu.iota {dimensions = array<i32: 1>} : vector<1x128xi32>
    %c0_i32 = arith.constant 0 : i32
    %21 = vector.broadcast %c0_i32 : i32 to vector<1x128xi32>
    %22 = arith.cmpi eq, %20, %21 : vector<1x128xi32>
    %cst_7 = arith.constant 0.000000e+00 : f32
    %23 = vector.shape_cast %19 : vector<1x1xf32> to vector<1x1xf32>
    %24 = vector.broadcast %23 : vector<1x1xf32> to vector<1x128xf32>
    %25 = vector.broadcast %cst_7 : f32 to vector<1x128xf32>
    %26 = arith.select %22, %24, %25 : vector<1x128xi1>, vector<1x128xf32>
    %27 = vector.shape_cast %26 : vector<1x128xf32> to vector<1x1x128xf32>
    %c0_8 = arith.constant 0 : index
    %c0_9 = arith.constant 0 : index
    %c0_10 = arith.constant 0 : index
    %28 = vector.load %arg5[%c0_8, %c0_9, %c0_10] : memref<1x1x128xf32, #tpu.memory_space<vmem>>, vector<1x1x128xf32>
    tpu.vector_store %arg5[%c0_8, %c0_9, %c0_10], %27 {strides = array<i32>} : memref<1x1x128xf32, #tpu.memory_space<vmem>>, vector<1x1x128xf32>,
    return
  }
  func.func @transform_0(%arg0: i32) -> i32 {
    %c0_i32 = arith.constant 0 : i32
    %c0_i32_0 = arith.constant 0 : i32
    return %c0_i32 : i32
  }
  func.func @transform_1(%arg0: i32) -> (i32, i32) {
    %c0_i32 = arith.constant 0 : i32
    %c0_i32_0 = arith.constant 0 : i32
    return %arg0, %c0_i32 : i32, i32
  }
  func.func @transform_2(%arg0: i32) -> (i32, i32) {
    %c0_i32 = arith.constant 0 : i32
    %c0_i32_0 = arith.constant 0 : i32
    return %arg0, %c0_i32 : i32, i32
  }
  func.func @transform_3(%arg0: i32) -> (i32, i32) {
    %c0_i32 = arith.constant 0 : i32
    %c0_i32_0 = arith.constant 0 : i32
    %c0_i32_1 = arith.constant 0 : i32
    return %c0_i32, %c0_i32_0 : i32, i32
  }
  func.func @transform_4(%arg0: i32) -> (i32, i32, i32) {
    %c0_i32 = arith.constant 0 : i32
    %c0_i32_0 = arith.constant 0 : i32
    %c0_i32_1 = arith.constant 0 : i32
    return %arg0, %c0_i32, %c0_i32_0 : i32, i32, i32
  }
}

</mosaic_0001>

<llo_original>
// kernel: smart_loss.3
$region0: #{smart_loss.3}
  #allocation0 [shape = 'u32[]', space=smem, size = 0x4, offset = 0x4, fixed_abs, tag = 'smem constant byte address 0x4 - core index']
  #allocation1 [shape = 'u32[144,128]{1,0:T(1,128)}', space=vmem, size = 0x12000, scoped, tag = 'internal scratch']
  %s0 = inlined_call_operand.vmem [shape: f32[3], index: 0, kind: input, shape index: {}]
  %s1 = inlined_call_operand.vmem [shape: f32[32,8], index: 1, kind: input, shape index: {}]
  %s2 = inlined_call_operand.vmem [shape: f32[32,8], index: 2, kind: input, shape index: {}]
  %s3 = inlined_call_operand.vmem [shape: f32[8,8], index: 3, kind: input, shape index: {}]
  %s4 = inlined_call_operand.vmem [shape: f32[2,1,128], index: 4, kind: output, shape index: {}]
  %s5 = sld [smem:[#allocation0]]
  $region53: #{smart_loss.3} parent=0
    _
  %s7 = ssub.s32 1, %s5
  %s8 = scalar_select 0, %s7, %s5
  $region1: #{smart_loss.3} parent=0
    #allocation2 [shape = 'u8[512]{0}', space=smem, size = 0x200, scoped, tag = 'input window, operand 0, single buffered']
    #allocation3 [shape = 's32[2]{0}', space=sflag, size = 0x8, scoped, tag = 'scoped memory for smart_loss.3']
    %9 = vsyncpa [#allocation3], 0
    loop: start=0, step=1, limit=4
    $region2: #{smart_loss.3} parent=1 // loop_pre_header
      _
    $region3: #{smart_loss.3} parent=1 // loop_header
      %s11 = sphi 0, %s15
      %p12 = scmp.ge.s32.totalorder %s11, 4
      %s19 = sphi 0, %s19
      %s21 = sphi 0, %s19
      %s22 = sphi 0, %s21
      %s36 = sphi 0, %s22
      %s42 = sphi 0, %s44
      %s45 = sphi 0, %s42
      %s46 = sphi 0, %s45
      %s62 = sphi 0, %s46
      %s68 = sphi 0, %s70
      %s71 = sphi 0, %s68
      %s72 = sphi 0, %s71
      %s88 = sphi 0, %s72
      %s92 = sphi 0, %s92
      %s94 = sphi 0, %s92
      %s95 = sphi 0, %s94
      %s109 = sphi 0, %s95
      %s115 = sphi 0, %s117
      %s118 = sphi 0, %s115
      %s119 = sphi 0, %s118
      %s135 = sphi 0, %s119
    $region4: #{smart_loss.3} parent=1 // loop_header_branch
      %14 = sbr.rel (%p12) target = $region8
    $region5: #{smart_loss.3} parent=1 // loop_body
      %s16 = ssub.s32 %s11, 1
      %s17 = ssub.s32 %s11, 2
      %s18 = sadd.s32 %s11, 1
      %s20 = sadd.s32 %s19, 1
      %p23 = scmp.eq.s32.totalorder %s11, 1
      %p24 = scmp.ne.s32.totalorder %s19, %s21
      %p25 = scmp.eq.s32.totalorder %s11, 0
      %p26 = por %p24, %p25
      %p27 = scmp.ne.s32.totalorder %s19, %s21
      %p28 = scmp.eq.s32.totalorder %s16, 1
      %p29 = por %p27, %p28
      %p30 = scmp.ne.s32.totalorder %s21, %s22
      %p31 = scmp.eq.s32.totalorder %s16, 0
      %p32 = por %p30, %p31
      %p33 = scmp.ne.s32.totalorder %s21, %s22
      %p34 = scmp.eq.s32.totalorder %s17, 1
      %p35 = por %p33, %p34
      %p37 = scmp.ne.s32.totalorder %s22, %s36
      %p38 = scmp.eq.s32.totalorder %s17, 0
      %p39 = por %p37, %p38
      %s40 = ssub.s32 %s11, %s18
      %p41 = scmp.eq.s32.totalorder %s40, 0
      %s43 = sadd.s32 %s42, 1
      %s44 = scalar_select %p41, %s42, %s43
      %p47 = pneg %p41
      %p48 = scmp.eq.s32.totalorder %s11, 1
      %p49 = por %p47, %p48
      %p50 = scmp.ne.s32.totalorder %s42, %s45
      %p51 = scmp.eq.s32.totalorder %s11, 0
      %p52 = por %p50, %p51
      %p53 = scmp.ne.s32.totalorder %s42, %s45
      %p54 = scmp.eq.s32.totalorder %s16, 1
      %p55 = por %p53, %p54
      %p56 = scmp.ne.s32.totalorder %s45, %s46
      %p57 = scmp.eq.s32.totalorder %s16, 0
      %p58 = por %p56, %p57
      %p59 = scmp.ne.s32.totalorder %s45, %s46
      %p60 = scmp.eq.s32.totalorder %s17, 1
      %p61 = por %p59, %p60
      %p63 = scmp.ne.s32.totalorder %s46, %s62
      %p64 = scmp.eq.s32.totalorder %s17, 0
      %p65 = por %p63, %p64
      %s66 = ssub.s32 %s11, %s18
      %p67 = scmp.eq.s32.totalorder %s66, 0
      %s69 = sadd.s32 %s68, 1
      %s70 = scalar_select %p67, %s68, %s69
      %p73 = pneg %p67
      %p74 = scmp.eq.s32.totalorder %s11, 1
      %p75 = por %p73, %p74
      %p76 = scmp.ne.s32.totalorder %s68, %s71
      %p77 = scmp.eq.s32.totalorder %s11, 0
      %p78 = por %p76, %p77
      %p79 = scmp.ne.s32.totalorder %s68, %s71
      %p80 = scmp.eq.s32.totalorder %s16, 1
      %p81 = por %p79, %p80
      %p82 = scmp.ne.s32.totalorder %s71, %s72
      %p83 = scmp.eq.s32.totalorder %s16, 0
      %p84 = por %p82, %p83
      %p85 = scmp.ne.s32.totalorder %s71, %s72
      %p86 = scmp.eq.s32.totalorder %s17, 1
      %p87 = por %p85, %p86
      %p89 = scmp.ne.s32.totalorder %s72, %s88
      %p90 = scmp.eq.s32.totalorder %s17, 0
      %p91 = por %p89, %p90
      %s93 = sadd.s32 %s92, 1
      %p96 = scmp.eq.s32.totalorder %s11, 1
      %p97 = scmp.ne.s32.totalorder %s92, %s94
      %p98 = scmp.eq.s32.totalorder %s11, 0
      %p99 = por %p97, %p98
      %p100 = scmp.ne.s32.totalorder %s92, %s94
      %p101 = scmp.eq.s32.totalorder %s16, 1
      %p102 = por %p100, %p101
      %p103 = scmp.ne.s32.totalorder %s94, %s95
      %p104 = scmp.eq.s32.totalorder %s16, 0
      %p105 = por %p103, %p104
      %p106 = scmp.ne.s32.totalorder %s94, %s95
      %p107 = scmp.eq.s32.totalorder %s17, 1
      %p108 = por %p106, %p107
      %p110 = scmp.ne.s32.totalorder %s95, %s109
      %p111 = scmp.eq.s32.totalorder %s17, 0
      %p112 = por %p110, %p111
      %s113 = ssub.s32 %s11, %s18
      %p114 = scmp.eq.s32.totalorder %s113, 0
      %s116 = sadd.s32 %s115, 1
      %s117 = scalar_select %p114, %s115, %s116
      %p120 = pneg %p114
      %p121 = scmp.eq.s32.totalorder %s11, 1
      %p122 = por %p120, %p121
      %p123 = scmp.ne.s32.totalorder %s115, %s118
      %p124 = scmp.eq.s32.totalorder %s11, 0
      %p125 = por %p123, %p124
      %p126 = scmp.ne.s32.totalorder %s115, %s118
      %p127 = scmp.eq.s32.totalorder %s16, 1
      %p128 = por %p126, %p127
      %p129 = scmp.ne.s32.totalorder %s118, %s119
      %p130 = scmp.eq.s32.totalorder %s16, 0
      %p131 = por %p129, %p130
      %p132 = scmp.ne.s32.totalorder %s118, %s119
      %p133 = scmp.eq.s32.totalorder %s17, 1
      %p134 = por %p132, %p133
      %p136 = scmp.ne.s32.totalorder %s119, %s135
      %p137 = scmp.eq.s32.totalorder %s17, 0
      %p138 = por %p136, %p137
      %p139 = scmp.le.s32.totalorder 1, %s11
      %p140 = scmp.lt.s32.totalorder %s11, 3
      %p141 = pnand %p139, %p140
      %p142 = pneg %p141
      // Predicated region
      $region9: #{smart_loss.3} parent=5 // pred_check
        _
      $region10: #{smart_loss.3} parent=5 // pred_check_branch
        %144 = sbr.rel (%p141) target = $region12
      $region11: #{smart_loss.3} parent=5 // pred_region
        %s145 = ssub.s32 %s11, 1
        // Predicated region
        $region13: #{smart_loss.3} parent=11 // pred_check
          %p146 = pneg %p32
        $region14: #{smart_loss.3} parent=11 // pred_check_branch
          %148 = sbr.rel (%p146) target = $region16
        $region15: #{smart_loss.3} parent=11 // pred_region
          %s150 = ssub.s32 16, 16
          %151 = vsyncadd [#allocation3], %s150
          %s153 = sshll.u32 %s0, 4
          %s154 = int_to_ptr.vmem [resolvable:$true] %s153
          %156 = dma.vmem_to_smem %s154, 16, [#allocation2], [#allocation3]
        $region16: #{smart_loss.3} parent=11 // pred_fallthru
          _
        // Predicated region
        $region17: #{smart_loss.3} parent=11 // pred_check
          %p157 = pneg %p105
        $region18: #{smart_loss.3} parent=11 // pred_check_branch
          %159 = sbr.rel (%p157) target = $region20
        $region19: #{smart_loss.3} parent=11 // pred_region
          _
        $region20: #{smart_loss.3} parent=11 // pred_fallthru
          _
      $region12: #{smart_loss.3} parent=5 // pred_fallthru
        _
      %p160 = scmp.lt.s32.totalorder %s11, 2
      // Predicated region
      $region21: #{smart_loss.3} parent=5 // pred_check
        %p161 = pneg %p160
      $region22: #{smart_loss.3} parent=5 // pred_check_branch
        %163 = sbr.rel (%p161) target = $region24
      $region23: #{smart_loss.3} parent=5 // pred_region
        // Predicated region
        $region25: #{smart_loss.3} parent=23 // pred_check
          %p164 = pneg %p52
        $region26: #{smart_loss.3} parent=23 // pred_check_branch
          %166 = sbr.rel (%p164) target = $region28
        $region27: #{smart_loss.3} parent=23 // pred_region
          %s167 = smul.u32 2, %s11
          %p168 = scmp.lt.s32.totalorder %s167, 3
          %s169 = scalar_select %p168, %s167, 3
          %s170 = smul.addr %s169, 8
          %s171 = scalar_lea.vmem %s1, %s170
          %s172 = smul.u32 2, %s11
        $region28: #{smart_loss.3} parent=23 // pred_fallthru
          _
        // Predicated region
        $region29: #{smart_loss.3} parent=23 // pred_check
          %p173 = pneg %p78
        $region30: #{smart_loss.3} parent=23 // pred_check_branch
          %175 = sbr.rel (%p173) target = $region32
        $region31: #{smart_loss.3} parent=23 // pred_region
          %s176 = smul.u32 2, %s11
          %p177 = scmp.lt.s32.totalorder %s176, 3
          %s178 = scalar_select %p177, %s176, 3
          %s179 = smul.addr %s178, 8
          %s180 = scalar_lea.vmem %s2, %s179
          %s181 = smul.u32 2, %s11
        $region32: #{smart_loss.3} parent=23 // pred_fallthru
          _
      $region24: #{smart_loss.3} parent=5 // pred_fallthru
        _
      %p182 = scmp.le.s32.totalorder 1, %s11
      %p183 = scmp.lt.s32.totalorder %s11, 3
      %p184 = pnand %p182, %p183
      %p185 = pneg %p184
      // Predicated region
      $region33: #{smart_loss.3} parent=5 // pred_check
        _
      $region34: #{smart_loss.3} parent=5 // pred_check_branch
        %187 = sbr.rel (%p184) target = $region36
      $region35: #{smart_loss.3} parent=5 // pred_region
        %s188 = ssub.s32 %s11, 1
        // Predicated region
        $region37: #{smart_loss.3} parent=35 // pred_check
          %p189 = pneg %p32
        $region38: #{smart_loss.3} parent=35 // pred_check_branch
          %191 = sbr.rel (%p189) target = $region40
        $region39: #{smart_loss.3} parent=35 // pred_region
          %192 = dma.done [#allocation3], 16
        $region40: #{smart_loss.3} parent=35 // pred_fallthru
          _
        %193 = sfence
        %p194 = pneg %p32
        %p195 = pneg %p29
        %s196 = smul.u32 2, %s16
        %p197 = scmp.lt.s32.totalorder %s196, 3
        %s198 = scalar_select %p197, %s196, 3
        %s199 = smul.addr %s198, 8
        %s200 = scalar_lea.vmem %s1, %s199
        %p201 = pneg %p58
        %p202 = pneg %p55
        %s203 = smul.u32 2, %s16
        %p204 = scmp.lt.s32.totalorder %s203, 3
        %s205 = scalar_select %p204, %s203, 3
        %s206 = smul.addr %s205, 8
        %s207 = scalar_lea.vmem %s2, %s206
        %p208 = pneg %p84
        %p209 = pneg %p81
        %p210 = pneg %p105
        %p211 = pneg %p102
        %p212 = pneg %p131
        %p213 = pneg %p128
        %p214 = scmp.lt.s32.totalorder %s16, 1
        %s215 = scalar_select %p214, %s16, 1
        %s216 = scalar_lea.vmem %s4, %s215
        %s217 = smul.u32 2, %s16
        %p218 = scmp.lt.s32.totalorder %s217, 3
        %s219 = scalar_select %p218, %s217, 3
        %s220 = smul.addr %s219, 8
        %s221 = scalar_lea.vmem %s1, %s220
        %s222 = smul.u32 2, %s16
        %s223 = smul.u32 2, %s16
        %p224 = scmp.lt.s32.totalorder %s223, 3
        %s225 = scalar_select %p224, %s223, 3
        %s226 = smul.addr %s225, 8
        %s227 = scalar_lea.vmem %s2, %s226
        %s228 = smul.u32 2, %s16
        %p229 = scmp.lt.s32.totalorder %s16, 1
        %s230 = scalar_select %p229, %s16, 1
        %s231 = scalar_lea.vmem %s4, %s230
        %s232 = sld [smem:[#allocation2 + $0x1]]
        %s233 = sld [smem:[#allocation2 + $0x2]]
        %v234 = vld [vmem:[%s221] sm:$0xff]
        %v235 = vld [vmem:[%s221 + $0x8] sm:$0xff]
        %v236 = vld [vmem:[%s3] sm:$0xff]
        %vm237 = vcmask 64512
        %v239 = vsel %vm237, %v234, 0
        %v242 = vsel %vm237, %v235, 0
        %244 = vmatprep.subr.mxu0 0.0
        %245 = vmatpush1.msra.mxu0 %v236
        %246 = vmatprep.subr.mxu0 0.0
        %247 = vmatpush1.msra.mxu0 0.0
        %248 = vmatprep.subr.mxu0 0.0
        %249 = vmatpush1.msra.mxu0 0.0
        %250 = vmatprep.subr.mxu0 0.0
        %251 = vmatpush1.msra.mxu0 0.0
        %252 = vmatprep.subr.mxu0 0.0
        %253 = vmatpush1.msra.mxu0 0.0
        %254 = vmatprep.subr.mxu0 0.0
        %255 = vmatpush1.msra.mxu0 0.0
        %256 = vmatprep.subr.mxu0 0.0
        %257 = vmatpush1.msra.mxu0 0.0
        %258 = vmatprep.subr.mxu0 0.0
        %259 = vmatpush1.msra.mxu0 0.0
        %260 = vmatprep.subr.mxu0 0.0
        %261 = vmatpush1.msra.mxu0 0.0
        %262 = vmatprep.subr.mxu0 0.0
        %263 = vmatpush1.msra.mxu0 0.0
        %264 = vmatprep.subr.mxu0 0.0
        %265 = vmatpush1.msra.mxu0 0.0
        %266 = vmatprep.subr.mxu0 0.0
        %267 = vmatpush1.msra.mxu0 0.0
        %268 = vmatprep.subr.mxu0 0.0
        %269 = vmatpush1.msra.mxu0 0.0
        %270 = vmatprep.subr.mxu0 0.0
        %271 = vmatpush1.msra.mxu0 0.0
        %272 = vmatprep.subr.mxu0 0.0
        %273 = vmatpush1.msra.mxu0 0.0
        %274 = vmatprep.subr.mxu0 0.0
        %275 = vmatpush1.msra.mxu0 0.0
        %276 = vmatprep.subr.mxu0 0.0
        %277 = vmatpush1.msra.mxu0 0.0
        %278 = vmatprep.subr.mxu0 0.0
        %279 = vmatpush1.msra.mxu0 0.0
        %280 = vmatprep.subr.mxu0 0.0
        %281 = vmatpush1.msra.mxu0 0.0
        %282 = vmatprep.subr.mxu0 0.0
        %283 = vmatpush1.msra.mxu0 0.0
        %284 = vmatprep.subr.mxu0 0.0
        %285 = vmatpush1.msra.mxu0 0.0
        %286 = vmatprep.subr.mxu0 0.0
        %287 = vmatpush1.msra.mxu0 0.0
        %288 = vmatprep.subr.mxu0 0.0
        %289 = vmatpush1.msra.mxu0 0.0
        %290 = vmatprep.subr.mxu0 0.0
        %291 = vmatpush1.msra.mxu0 0.0
        %292 = vmatprep.subr.mxu0 0.0
        %293 = vmatpush1.msra.mxu0 0.0
        %294 = vmatprep.subr.mxu0 0.0
        %295 = vmatpush1.msra.mxu0 0.0
        %296 = vmatprep.subr.mxu0 0.0
        %297 = vmatpush1.msra.mxu0 0.0
        %298 = vmatprep.subr.mxu0 0.0
        %299 = vmatpush1.msra.mxu0 0.0
        %300 = vmatprep.subr.mxu0 0.0
        %301 = vmatpush1.msra.mxu0 0.0
        %302 = vmatprep.subr.mxu0 0.0
        %303 = vmatpush1.msra.mxu0 0.0
        %304 = vmatprep.subr.mxu0 0.0
        %305 = vmatpush1.msra.mxu0 0.0
        %306 = vmatprep.subr.mxu0 0.0
        %307 = vmatpush1.msra.mxu0 0.0
        %308 = vmatprep.mubr.f32.mxu0 0.0
        %309 = vmatmul.mubr.f32.gmra.mrb[0].mxu0 %v239
        %v310 = vpop.f32.mrb[0].mxu0
        %v311 = vadd.f32 0.0, %v310
        %v312 = vpop.f32.mrb[0].mxu0
        %313 = vmatprep.mubr.f32.mxu0 0.0
        %314 = vmatmul.mubr.f32.gmra.mrb[0].mxu0 %v242
        %v315 = vpop.f32.mrb[0].mxu0
        %v316 = vadd.f32 0.0, %v315
        %v317 = vpop.f32.mrb[0].mxu0
        %318 = vdwg.mxu0
        %s319 = ssub.f32 %s233, 1.0
        %v320 = vld [vmem:[%s227] sm:$0xff]
        %v321 = vld [vmem:[%s227 + $0x8] sm:$0xff]
        %v322 = vstv %s319
        %v323 = vmul.f32 %v322, %v320
        %v324 = vmul.f32 %v322, %v321
        %v325 = vadd.f32 %v234, %v323
        %v326 = vadd.f32 %v235, %v324
        %s327 = smul.f32 %s233, %s232
        %v328 = vstv %s327
        %v329 = vmul.f32 %v328, %v311
        %v330 = vmul.f32 %v328, %v316
        %v331 = vadd.f32 %v325, %v329
        %v332 = vadd.f32 %v326, %v330
        %v333 = vmul.f32 %v331, %v331
        %v334 = vmul.f32 %v332, %v332
        %v335 = vsel %vm237, %v333, 0.0
        %v336 = vsel %vm237, %v334, 0.0
        %v337 = vadd.f32 %v335, %v336
        %338 = vadd.xlane.f32.xlu0 %v337
        %v339 = vpop.xlane.xlu0 %338
        %v340 = vrot.slane %v339, 4
        %v341 = vadd.f32 %v339, %v340
        %v342 = vrot.slane %v341, 2
        %v343 = vadd.f32 %v341, %v342
        %v344 = vrot.slane %v343, 1
        %v345 = vadd.f32 %v343, %v344
        %s346 = vtos %v345
        %v347 = vlaneseq
        %v348 = vand.u32 %v347, 127
        %vm349 = vcmp.eq.s32.totalorder %v348, 0
        %v350 = vstv %s346
        %v351 = vsel %vm349, %v350, 0.0
        %352 = vst [vmem:[%s231] sm:$0x1] %v351
        %p353 = scmp.lt.s32.totalorder %s16, 1
        %s354 = scalar_select %p353, %s16, 1
        %s355 = scalar_lea.vmem %s4, %s354
        // Predicated region
        $region41: #{smart_loss.3} parent=35 // pred_check
          %p356 = pneg %p128
        $region42: #{smart_loss.3} parent=35 // pred_check_branch
          %358 = sbr.rel (%p356) target = $region44
        $region43: #{smart_loss.3} parent=35 // pred_region
          _
        $region44: #{smart_loss.3} parent=35 // pred_fallthru
          _
      $region36: #{smart_loss.3} parent=5 // pred_fallthru
        _
      %p359 = scmp.le.s32.totalorder 2, %s11
      // Predicated region
      $region45: #{smart_loss.3} parent=5 // pred_check
        %p360 = pneg %p359
      $region46: #{smart_loss.3} parent=5 // pred_check_branch
        %362 = sbr.rel (%p360) target = $region48
      $region47: #{smart_loss.3} parent=5 // pred_region
        %s363 = ssub.s32 %s11, 2
        // Predicated region
        $region49: #{smart_loss.3} parent=47 // pred_check
          %p364 = pneg %p134
        $region50: #{smart_loss.3} parent=47 // pred_check_branch
          %366 = sbr.rel (%p364) target = $region52
        $region51: #{smart_loss.3} parent=47 // pred_region
          %p367 = scmp.lt.s32.totalorder %s17, 1
          %s368 = scalar_select %p367, %s17, 1
          %s369 = scalar_lea.vmem %s4, %s368
        $region52: #{smart_loss.3} parent=47 // pred_fallthru
          _
      $region48: #{smart_loss.3} parent=5 // pred_fallthru
        _
    $region6: #{smart_loss.3} parent=1 // loop_footer
      %s15 = sadd.s32 1, %s11
    $region7: #{smart_loss.3} parent=1 // loop_footer_branch
      %10 = sbr.rel target = $region3
    $region8: #{smart_loss.3} parent=1 // loop_exit
      _
    %370 = vsyncpa [#allocation3], 1
    %s371 = scalar_lea.sflag [#allocation3], 1
    %372 = vsyncpa %s371, 1

// kernel: smart_loss.2
$region0: #{smart_loss.2}
  #allocation0 [shape = 'u32[]', space=smem, size = 0x4, offset = 0x4, fixed_abs, tag = 'smem constant byte address 0x4 - core index']
  #allocation1 [shape = 'u32[144,128]{1,0:T(1,128)}', space=vmem, size = 0x12000, scoped, tag = 'internal scratch']
  %s0 = inlined_call_operand.vmem [shape: f32[3], index: 0, kind: input, shape index: {}]
  %s1 = inlined_call_operand.vmem [shape: bf16[32,32], index: 1, kind: input, shape index: {}]
  %s2 = inlined_call_operand.vmem [shape: bf16[32,32], index: 2, kind: input, shape index: {}]
  %s3 = inlined_call_operand.vmem [shape: bf16[32,8], index: 3, kind: input, shape index: {}]
  %s4 = inlined_call_operand.vmem [shape: bf16[8,32], index: 4, kind: input, shape index: {}]
  %s5 = inlined_call_operand.vmem [shape: f32[1,8], index: 5, kind: input, shape index: {}]
  %s6 = inlined_call_operand.vmem [shape: f32[32,8], index: 6, kind: input, shape index: {}]
  %s7 = inlined_call_operand.vmem [shape: f32[2,1,128], index: 7, kind: output, shape index: {0}]
  %s8 = inlined_call_operand.vmem [shape: f32[32,8], index: 8, kind: output, shape index: {1}]
  %s9 = inlined_call_operand.vmem [shape: f32[32,8], index: 9, kind: output, shape index: {2}]
  %10 = xla_tuple %s7, %s8, %s9
  %s11 = sld [smem:[#allocation0]]
  $region81: #{smart_loss.2} parent=0
    _
  %s13 = ssub.s32 1, %s11
  %s14 = scalar_select 0, %s13, %s11
  $region1: #{smart_loss.2} parent=0
    #allocation2 [shape = 'u8[512]{0}', space=smem, size = 0x200, scoped, tag = 'input window, operand 0, single buffered']
    #allocation3 [shape = 's32[2]{0}', space=sflag, size = 0x8, scoped, tag = 'scoped memory for smart_loss.2']
    %15 = vsyncpa [#allocation3], 0
    loop: start=0, step=1, limit=4
    $region2: #{smart_loss.2} parent=1 // loop_pre_header
      _
    $region3: #{smart_loss.2} parent=1 // loop_header
      %s17 = sphi 0, %s21
      %p18 = scmp.ge.s32.totalorder %s17, 4
      %s25 = sphi 0, %s25
      %s27 = sphi 0, %s25
      %s28 = sphi 0, %s27
      %s42 = sphi 0, %s28
      %s48 = sphi 0, %s50
      %s51 = sphi 0, %s48
      %s52 = sphi 0, %s51
      %s68 = sphi 0, %s52
      %s74 = sphi 0, %s76
      %s77 = sphi 0, %s74
      %s78 = sphi 0, %s77
      %s94 = sphi 0, %s78
      %s98 = sphi 0, %s98
      %s100 = sphi 0, %s98
      %s101 = sphi 0, %s100
      %s115 = sphi 0, %s101
      %s119 = sphi 0, %s119
      %s121 = sphi 0, %s119
      %s122 = sphi 0, %s121
      %s136 = sphi 0, %s122
      %s140 = sphi 0, %s140
      %s142 = sphi 0, %s140
      %s143 = sphi 0, %s142
      %s157 = sphi 0, %s143
      %s163 = sphi 0, %s165
      %s166 = sphi 0, %s163
      %s167 = sphi 0, %s166
      %s183 = sphi 0, %s167
      %s189 = sphi 0, %s191
      %s192 = sphi 0, %s189
      %s193 = sphi 0, %s192
      %s209 = sphi 0, %s193
      %s215 = sphi 0, %s217
      %s218 = sphi 0, %s215
      %s219 = sphi 0, %s218
      %s235 = sphi 0, %s219
      %s241 = sphi 0, %s243
      %s244 = sphi 0, %s241
      %s245 = sphi 0, %s244
      %s261 = sphi 0, %s245
    $region4: #{smart_loss.2} parent=1 // loop_header_branch
      %20 = sbr.rel (%p18) target = $region8
    $region5: #{smart_loss.2} parent=1 // loop_body
      %s22 = ssub.s32 %s17, 1
      %s23 = ssub.s32 %s17, 2
      %s24 = sadd.s32 %s17, 1
      %s26 = sadd.s32 %s25, 1
      %p29 = scmp.eq.s32.totalorder %s17, 1
      %p30 = scmp.ne.s32.totalorder %s25, %s27
      %p31 = scmp.eq.s32.totalorder %s17, 0
      %p32 = por %p30, %p31
      %p33 = scmp.ne.s32.totalorder %s25, %s27
      %p34 = scmp.eq.s32.totalorder %s22, 1
      %p35 = por %p33, %p34
      %p36 = scmp.ne.s32.totalorder %s27, %s28
      %p37 = scmp.eq.s32.totalorder %s22, 0
      %p38 = por %p36, %p37
      %p39 = scmp.ne.s32.totalorder %s27, %s28
      %p40 = scmp.eq.s32.totalorder %s23, 1
      %p41 = por %p39, %p40
      %p43 = scmp.ne.s32.totalorder %s28, %s42
      %p44 = scmp.eq.s32.totalorder %s23, 0
      %p45 = por %p43, %p44
      %s46 = ssub.s32 %s17, %s24
      %p47 = scmp.eq.s32.totalorder %s46, 0
      %s49 = sadd.s32 %s48, 1
      %s50 = scalar_select %p47, %s48, %s49
      %p53 = pneg %p47
      %p54 = scmp.eq.s32.totalorder %s17, 1
      %p55 = por %p53, %p54
      %p56 = scmp.ne.s32.totalorder %s48, %s51
      %p57 = scmp.eq.s32.totalorder %s17, 0
      %p58 = por %p56, %p57
      %p59 = scmp.ne.s32.totalorder %s48, %s51
      %p60 = scmp.eq.s32.totalorder %s22, 1
      %p61 = por %p59, %p60
      %p62 = scmp.ne.s32.totalorder %s51, %s52
      %p63 = scmp.eq.s32.totalorder %s22, 0
      %p64 = por %p62, %p63
      %p65 = scmp.ne.s32.totalorder %s51, %s52
      %p66 = scmp.eq.s32.totalorder %s23, 1
      %p67 = por %p65, %p66
      %p69 = scmp.ne.s32.totalorder %s52, %s68
      %p70 = scmp.eq.s32.totalorder %s23, 0
      %p71 = por %p69, %p70
      %s72 = ssub.s32 %s17, %s24
      %p73 = scmp.eq.s32.totalorder %s72, 0
      %s75 = sadd.s32 %s74, 1
      %s76 = scalar_select %p73, %s74, %s75
      %p79 = pneg %p73
      %p80 = scmp.eq.s32.totalorder %s17, 1
      %p81 = por %p79, %p80
      %p82 = scmp.ne.s32.totalorder %s74, %s77
      %p83 = scmp.eq.s32.totalorder %s17, 0
      %p84 = por %p82, %p83
      %p85 = scmp.ne.s32.totalorder %s74, %s77
      %p86 = scmp.eq.s32.totalorder %s22, 1
      %p87 = por %p85, %p86
      %p88 = scmp.ne.s32.totalorder %s77, %s78
      %p89 = scmp.eq.s32.totalorder %s22, 0
      %p90 = por %p88, %p89
      %p91 = scmp.ne.s32.totalorder %s77, %s78
      %p92 = scmp.eq.s32.totalorder %s23, 1
      %p93 = por %p91, %p92
      %p95 = scmp.ne.s32.totalorder %s78, %s94
      %p96 = scmp.eq.s32.totalorder %s23, 0
      %p97 = por %p95, %p96
      %s99 = sadd.s32 %s98, 1
      %p102 = scmp.eq.s32.totalorder %s17, 1
      %p103 = scmp.ne.s32.totalorder %s98, %s100
      %p104 = scmp.eq.s32.totalorder %s17, 0
      %p105 = por %p103, %p104
      %p106 = scmp.ne.s32.totalorder %s98, %s100
      %p107 = scmp.eq.s32.totalorder %s22, 1
      %p108 = por %p106, %p107
      %p109 = scmp.ne.s32.totalorder %s100, %s101
      %p110 = scmp.eq.s32.totalorder %s22, 0
      %p111 = por %p109, %p110
      %p112 = scmp.ne.s32.totalorder %s100, %s101
      %p113 = scmp.eq.s32.totalorder %s23, 1
      %p114 = por %p112, %p113
      %p116 = scmp.ne.s32.totalorder %s101, %s115
      %p117 = scmp.eq.s32.totalorder %s23, 0
      %p118 = por %p116, %p117
      %s120 = sadd.s32 %s119, 1
      %p123 = scmp.eq.s32.totalorder %s17, 1
      %p124 = scmp.ne.s32.totalorder %s119, %s121
      %p125 = scmp.eq.s32.totalorder %s17, 0
      %p126 = por %p124, %p125
      %p127 = scmp.ne.s32.totalorder %s119, %s121
      %p128 = scmp.eq.s32.totalorder %s22, 1
      %p129 = por %p127, %p128
      %p130 = scmp.ne.s32.totalorder %s121, %s122
      %p131 = scmp.eq.s32.totalorder %s22, 0
      %p132 = por %p130, %p131
      %p133 = scmp.ne.s32.totalorder %s121, %s122
      %p134 = scmp.eq.s32.totalorder %s23, 1
      %p135 = por %p133, %p134
      %p137 = scmp.ne.s32.totalorder %s122, %s136
      %p138 = scmp.eq.s32.totalorder %s23, 0
      %p139 = por %p137, %p138
      %s141 = sadd.s32 %s140, 1
      %p144 = scmp.eq.s32.totalorder %s17, 1
      %p145 = scmp.ne.s32.totalorder %s140, %s142
      %p146 = scmp.eq.s32.totalorder %s17, 0
      %p147 = por %p145, %p146
      %p148 = scmp.ne.s32.totalorder %s140, %s142
      %p149 = scmp.eq.s32.totalorder %s22, 1
      %p150 = por %p148, %p149
      %p151 = scmp.ne.s32.totalorder %s142, %s143
      %p152 = scmp.eq.s32.totalorder %s22, 0
      %p153 = por %p151, %p152
      %p154 = scmp.ne.s32.totalorder %s142, %s143
      %p155 = scmp.eq.s32.totalorder %s23, 1
      %p156 = por %p154, %p155
      %p158 = scmp.ne.s32.totalorder %s143, %s157
      %p159 = scmp.eq.s32.totalorder %s23, 0
      %p160 = por %p158, %p159
      %s161 = ssub.s32 %s17, %s24
      %p162 = scmp.eq.s32.totalorder %s161, 0
      %s164 = sadd.s32 %s163, 1
      %s165 = scalar_select %p162, %s163, %s164
      %p168 = pneg %p162
      %p169 = scmp.eq.s32.totalorder %s17, 1
      %p170 = por %p168, %p169
      %p171 = scmp.ne.s32.totalorder %s163, %s166
      %p172 = scmp.eq.s32.totalorder %s17, 0
      %p173 = por %p171, %p172
      %p174 = scmp.ne.s32.totalorder %s163, %s166
      %p175 = scmp.eq.s32.totalorder %s22, 1
      %p176 = por %p174, %p175
      %p177 = scmp.ne.s32.totalorder %s166, %s167
      %p178 = scmp.eq.s32.totalorder %s22, 0
      %p179 = por %p177, %p178
      %p180 = scmp.ne.s32.totalorder %s166, %s167
      %p181 = scmp.eq.s32.totalorder %s23, 1
      %p182 = por %p180, %p181
      %p184 = scmp.ne.s32.totalorder %s167, %s183
      %p185 = scmp.eq.s32.totalorder %s23, 0
      %p186 = por %p184, %p185
      %s187 = ssub.s32 %s17, %s24
      %p188 = scmp.eq.s32.totalorder %s187, 0
      %s190 = sadd.s32 %s189, 1
      %s191 = scalar_select %p188, %s189, %s190
      %p194 = pneg %p188
      %p195 = scmp.eq.s32.totalorder %s17, 1
      %p196 = por %p194, %p195
      %p197 = scmp.ne.s32.totalorder %s189, %s192
      %p198 = scmp.eq.s32.totalorder %s17, 0
      %p199 = por %p197, %p198
      %p200 = scmp.ne.s32.totalorder %s189, %s192
      %p201 = scmp.eq.s32.totalorder %s22, 1
      %p202 = por %p200, %p201
      %p203 = scmp.ne.s32.totalorder %s192, %s193
      %p204 = scmp.eq.s32.totalorder %s22, 0
      %p205 = por %p203, %p204
      %p206 = scmp.ne.s32.totalorder %s192, %s193
      %p207 = scmp.eq.s32.totalorder %s23, 1
      %p208 = por %p206, %p207
      %p210 = scmp.ne.s32.totalorder %s193, %s209
      %p211 = scmp.eq.s32.totalorder %s23, 0
      %p212 = por %p210, %p211
      %s213 = ssub.s32 %s17, %s24
      %p214 = scmp.eq.s32.totalorder %s213, 0
      %s216 = sadd.s32 %s215, 1
      %s217 = scalar_select %p214, %s215, %s216
      %p220 = pneg %p214
      %p221 = scmp.eq.s32.totalorder %s17, 1
      %p222 = por %p220, %p221
      %p223 = scmp.ne.s32.totalorder %s215, %s218
      %p224 = scmp.eq.s32.totalorder %s17, 0
      %p225 = por %p223, %p224
      %p226 = scmp.ne.s32.totalorder %s215, %s218
      %p227 = scmp.eq.s32.totalorder %s22, 1
      %p228 = por %p226, %p227
      %p229 = scmp.ne.s32.totalorder %s218, %s219
      %p230 = scmp.eq.s32.totalorder %s22, 0
      %p231 = por %p229, %p230
      %p232 = scmp.ne.s32.totalorder %s218, %s219
      %p233 = scmp.eq.s32.totalorder %s23, 1
      %p234 = por %p232, %p233
      %p236 = scmp.ne.s32.totalorder %s219, %s235
      %p237 = scmp.eq.s32.totalorder %s23, 0
      %p238 = por %p236, %p237
      %s239 = ssub.s32 %s17, %s24
      %p240 = scmp.eq.s32.totalorder %s239, 0
      %s242 = sadd.s32 %s241, 1
      %s243 = scalar_select %p240, %s241, %s242
      %p246 = pneg %p240
      %p247 = scmp.eq.s32.totalorder %s17, 1
      %p248 = por %p246, %p247
      %p249 = scmp.ne.s32.totalorder %s241, %s244
      %p250 = scmp.eq.s32.totalorder %s17, 0
      %p251 = por %p249, %p250
      %p252 = scmp.ne.s32.totalorder %s241, %s244
      %p253 = scmp.eq.s32.totalorder %s22, 1
      %p254 = por %p252, %p253
      %p255 = scmp.ne.s32.totalorder %s244, %s245
      %p256 = scmp.eq.s32.totalorder %s22, 0
      %p257 = por %p255, %p256
      %p258 = scmp.ne.s32.totalorder %s244, %s245
      %p259 = scmp.eq.s32.totalorder %s23, 1
      %p260 = por %p258, %p259
      %p262 = scmp.ne.s32.totalorder %s245, %s261
      %p263 = scmp.eq.s32.totalorder %s23, 0
      %p264 = por %p262, %p263
      %p265 = scmp.le.s32.totalorder 1, %s17
      %p266 = scmp.lt.s32.totalorder %s17, 3
      %p267 = pnand %p265, %p266
      %p268 = pneg %p267
      // Predicated region
      $region9: #{smart_loss.2} parent=5 // pred_check
        _
      $region10: #{smart_loss.2} parent=5 // pred_check_branch
        %270 = sbr.rel (%p267) target = $region12
      $region11: #{smart_loss.2} parent=5 // pred_region
        %s271 = ssub.s32 %s17, 1
        // Predicated region
        $region13: #{smart_loss.2} parent=11 // pred_check
          %p272 = pneg %p38
        $region14: #{smart_loss.2} parent=11 // pred_check_branch
          %274 = sbr.rel (%p272) target = $region16
        $region15: #{smart_loss.2} parent=11 // pred_region
          %s276 = ssub.s32 16, 16
          %277 = vsyncadd [#allocation3], %s276
          %s279 = sshll.u32 %s0, 4
          %s280 = int_to_ptr.vmem [resolvable:$true] %s279
          %282 = dma.vmem_to_smem %s280, 16, [#allocation2], [#allocation3]
        $region16: #{smart_loss.2} parent=11 // pred_fallthru
          _
        // Predicated region
        $region17: #{smart_loss.2} parent=11 // pred_check
          %p283 = pneg %p111
        $region18: #{smart_loss.2} parent=11 // pred_check_branch
          %285 = sbr.rel (%p283) target = $region20
        $region19: #{smart_loss.2} parent=11 // pred_region
          _
        $region20: #{smart_loss.2} parent=11 // pred_fallthru
          _
        // Predicated region
        $region21: #{smart_loss.2} parent=11 // pred_check
          %p286 = pneg %p132
        $region22: #{smart_loss.2} parent=11 // pred_check_branch
          %288 = sbr.rel (%p286) target = $region24
        $region23: #{smart_loss.2} parent=11 // pred_region
          _
        $region24: #{smart_loss.2} parent=11 // pred_fallthru
          _
        // Predicated region
        $region25: #{smart_loss.2} parent=11 // pred_check
          %p289 = pneg %p153
        $region26: #{smart_loss.2} parent=11 // pred_check_branch
          %291 = sbr.rel (%p289) target = $region28
        $region27: #{smart_loss.2} parent=11 // pred_region
          _
        $region28: #{smart_loss.2} parent=11 // pred_fallthru
          _
      $region12: #{smart_loss.2} parent=5 // pred_fallthru
        _
      %p292 = scmp.lt.s32.totalorder %s17, 2
      // Predicated region
      $region29: #{smart_loss.2} parent=5 // pred_check
        %p293 = pneg %p292
      $region30: #{smart_loss.2} parent=5 // pred_check_branch
        %295 = sbr.rel (%p293) target = $region32
      $region31: #{smart_loss.2} parent=5 // pred_region
        // Predicated region
        $region33: #{smart_loss.2} parent=31 // pred_check
          %p296 = pneg %p58
        $region34: #{smart_loss.2} parent=31 // pred_check_branch
          %298 = sbr.rel (%p296) target = $region36
        $region35: #{smart_loss.2} parent=31 // pred_region
          %s299 = smul.u32 2, %s17
          %p300 = scmp.lt.s32.totalorder %s299, 3
          %s301 = scalar_select %p300, %s299, 3
          %s302 = smul.addr %s301, 4
          %s303 = scalar_lea.vmem %s1, %s302
          %s304 = smul.u32 2, %s17
        $region36: #{smart_loss.2} parent=31 // pred_fallthru
          _
        // Predicated region
        $region37: #{smart_loss.2} parent=31 // pred_check
          %p305 = pneg %p84
        $region38: #{smart_loss.2} parent=31 // pred_check_branch
          %307 = sbr.rel (%p305) target = $region40
        $region39: #{smart_loss.2} parent=31 // pred_region
          %s308 = smul.u32 2, %s17
          %p309 = scmp.lt.s32.totalorder %s308, 3
          %s310 = scalar_select %p309, %s308, 3
          %s311 = smul.addr %s310, 4
          %s312 = scalar_lea.vmem %s2, %s311
          %s313 = smul.u32 2, %s17
        $region40: #{smart_loss.2} parent=31 // pred_fallthru
          _
        // Predicated region
        $region41: #{smart_loss.2} parent=31 // pred_check
          %p314 = pneg %p173
        $region42: #{smart_loss.2} parent=31 // pred_check_branch
          %316 = sbr.rel (%p314) target = $region44
        $region43: #{smart_loss.2} parent=31 // pred_region
          %s317 = smul.u32 2, %s17
          %p318 = scmp.lt.s32.totalorder %s317, 3
          %s319 = scalar_select %p318, %s317, 3
          %s320 = smul.addr %s319, 8
          %s321 = scalar_lea.vmem %s6, %s320
          %s322 = smul.u32 2, %s17
        $region44: #{smart_loss.2} parent=31 // pred_fallthru
          _
      $region32: #{smart_loss.2} parent=5 // pred_fallthru
        _
      %p323 = scmp.le.s32.totalorder 1, %s17
      %p324 = scmp.lt.s32.totalorder %s17, 3
      %p325 = pnand %p323, %p324
      %p326 = pneg %p325
      // Predicated region
      $region45: #{smart_loss.2} parent=5 // pred_check
        _
      $region46: #{smart_loss.2} parent=5 // pred_check_branch
        %328 = sbr.rel (%p325) target = $region48
      $region47: #{smart_loss.2} parent=5 // pred_region
        %s329 = ssub.s32 %s17, 1
        // Predicated region
        $region49: #{smart_loss.2} parent=47 // pred_check
          %p330 = pneg %p38
        $region50: #{smart_loss.2} parent=47 // pred_check_branch
          %332 = sbr.rel (%p330) target = $region52
        $region51: #{smart_loss.2} parent=47 // pred_region
          %333 = dma.done [#allocation3], 16
        $region52: #{smart_loss.2} parent=47 // pred_fallthru
          _
        %334 = sfence
        %p335 = pneg %p38
        %p336 = pneg %p35
        %s337 = smul.u32 2, %s22
        %p338 = scmp.lt.s32.totalorder %s337, 3
        %s339 = scalar_select %p338, %s337, 3
        %s340 = smul.addr %s339, 4
        %s341 = scalar_lea.vmem %s1, %s340
        %p342 = pneg %p64
        %p343 = pneg %p61
        %s344 = smul.u32 2, %s22
        %p345 = scmp.lt.s32.totalorder %s344, 3
        %s346 = scalar_select %p345, %s344, 3
        %s347 = smul.addr %s346, 4
        %s348 = scalar_lea.vmem %s2, %s347
        %p349 = pneg %p90
        %p350 = pneg %p87
        %p351 = pneg %p111
        %p352 = pneg %p108
        %p353 = pneg %p132
        %p354 = pneg %p129
        %p355 = pneg %p153
        %p356 = pneg %p150
        %s357 = smul.u32 2, %s22
        %p358 = scmp.lt.s32.totalorder %s357, 3
        %s359 = scalar_select %p358, %s357, 3
        %s360 = smul.addr %s359, 8
        %s361 = scalar_lea.vmem %s6, %s360
        %p362 = pneg %p179
        %p363 = pneg %p176
        %p364 = pneg %p205
        %p365 = pneg %p202
        %p366 = scmp.lt.s32.totalorder %s22, 1
        %s367 = scalar_select %p366, %s22, 1
        %s368 = scalar_lea.vmem %s7, %s367
        %p369 = pneg %p231
        %p370 = pneg %p228
        %s371 = smul.u32 2, %s22
        %p372 = scmp.lt.s32.totalorder %s371, 3
        %s373 = scalar_select %p372, %s371, 3
        %s374 = smul.addr %s373, 8
        %s375 = scalar_lea.vmem %s8, %s374
        %p376 = pneg %p257
        %p377 = pneg %p254
        %s378 = smul.u32 2, %s22
        %p379 = scmp.lt.s32.totalorder %s378, 3
        %s380 = scalar_select %p379, %s378, 3
        %s381 = smul.addr %s380, 8
        %s382 = scalar_lea.vmem %s9, %s381
        %s383 = smul.u32 2, %s22
        %p384 = scmp.lt.s32.totalorder %s383, 3
        %s385 = scalar_select %p384, %s383, 3
        %s386 = smul.addr %s385, 4
        %s387 = scalar_lea.vmem %s1, %s386
        %s388 = smul.u32 2, %s22
        %s389 = smul.u32 2, %s22
        %p390 = scmp.lt.s32.totalorder %s389, 3
        %s391 = scalar_select %p390, %s389, 3
        %s392 = smul.addr %s391, 4
        %s393 = scalar_lea.vmem %s2, %s392
        %s394 = smul.u32 2, %s22
        %s395 = smul.u32 2, %s22
        %p396 = scmp.lt.s32.totalorder %s395, 3
        %s397 = scalar_select %p396, %s395, 3
        %s398 = smul.addr %s397, 8
        %s399 = scalar_lea.vmem %s6, %s398
        %s400 = smul.u32 2, %s22
        %p401 = scmp.lt.s32.totalorder %s22, 1
        %s402 = scalar_select %p401, %s22, 1
        %s403 = scalar_lea.vmem %s7, %s402
        %s404 = smul.u32 2, %s22
        %p405 = scmp.lt.s32.totalorder %s404, 3
        %s406 = scalar_select %p405, %s404, 3
        %s407 = smul.addr %s406, 8
        %s408 = scalar_lea.vmem %s8, %s407
        %s409 = smul.u32 2, %s22
        %s410 = smul.u32 2, %s22
        %p411 = scmp.lt.s32.totalorder %s410, 3
        %s412 = scalar_select %p411, %s410, 3
        %s413 = smul.addr %s412, 8
        %s414 = scalar_lea.vmem %s9, %s413
        %s415 = smul.u32 2, %s22
        %s417 = sld [smem:[#allocation2]]
        %v418 = vld [vmem:[%s393] sm:$0xf]
        %v419 = vld [vmem:[%s393 + $0x4] sm:$0xf]
        %v420 = vld [vmem:[%s3] sm:$0xf]
        %v421 = vld [vmem:[%s3 + $0x4] sm:$0xf]
        %v422 = vld [vmem:[%s3 + $0x8] sm:$0xf]
        %v423 = vld [vmem:[%s3 + $0xc] sm:$0xf]
        %v424 = vld [vmem:[%s387] sm:$0xf]
        %v425 = vld [vmem:[%s387 + $0x4] sm:$0xf]
        %v428 = vunpack.c.l.b16 %v418
        %v429 = vunpack.c.l.b16 %v419
        %v430 = vpack.c.b16 %v429, %v428
        %v435 = vunpack.c.l.b16 %v420
        %v436 = vunpack.c.l.b16 %v421
        %v437 = vunpack.c.l.b16 %v422
        %v438 = vunpack.c.l.b16 %v423
        %v439 = vpack.c.b16 %v436, %v435
        %v440 = vpack.c.b16 %v438, %v437
        %vm443 = vcmask 261120
        %v445 = vsel %vm443, %v430, 0
        %447 = vmatprep.subr.bf16.mxu0 0
        %448 = vmatpush1.bf16.msra.mxu0 %v439
        %449 = vmatprep.subr.bf16.mxu0 0
        %450 = vmatpush1.bf16.msra.mxu0 %v440
        %451 = vmatprep.subr.bf16.mxu0 0
        %452 = vmatpush1.bf16.msra.mxu0 0
        %453 = vmatprep.subr.bf16.mxu0 0
        %454 = vmatpush1.bf16.msra.mxu0 0
        %455 = vmatprep.subr.bf16.mxu0 0
        %456 = vmatpush1.bf16.msra.mxu0 0
        %457 = vmatprep.subr.bf16.mxu0 0
        %458 = vmatpush1.bf16.msra.mxu0 0
        %459 = vmatprep.subr.bf16.mxu0 0
        %460 = vmatpush1.bf16.msra.mxu0 0
        %461 = vmatprep.subr.bf16.mxu0 0
        %462 = vmatpush1.bf16.msra.mxu0 0
        %463 = vmatprep.subr.bf16.mxu0 0
        %464 = vmatpush1.bf16.msra.mxu0 0
        %465 = vmatprep.subr.bf16.mxu0 0
        %466 = vmatpush1.bf16.msra.mxu0 0
        %467 = vmatprep.subr.bf16.mxu0 0
        %468 = vmatpush1.bf16.msra.mxu0 0
        %469 = vmatprep.subr.bf16.mxu0 0
        %470 = vmatpush1.bf16.msra.mxu0 0
        %471 = vmatprep.subr.bf16.mxu0 0
        %472 = vmatpush1.bf16.msra.mxu0 0
        %473 = vmatprep.subr.bf16.mxu0 0
        %474 = vmatpush1.bf16.msra.mxu0 0
        %475 = vmatprep.subr.bf16.mxu0 0
        %476 = vmatpush1.bf16.msra.mxu0 0
        %477 = vmatprep.subr.bf16.mxu0 0
        %478 = vmatpush1.bf16.msra.mxu0 0
        %479 = vmatprep.mubr.bf16.mxu0 0
        %480 = vmatmul.mubr.bf16.gmra.mrb[0].mxu0 %v445
        %v481 = vpop.f32.mrb[0].mxu0
        %v482 = vadd.f32 0.0, %v481
        %v483 = vpop.f32.mrb[0].mxu0
        %v484 = vpop.f32.mrb[0].mxu0
        %v485 = vadd.f32 0.0, %v484
        %v486 = vpop.f32.mrb[0].mxu0
        %487 = vdwg.mxu0
        %v488 = vstv %s417
        %v489 = vmul.f32 %v488, %v482
        %v490 = vmul.f32 %v488, %v485
        %v493 = vunpack.c.l.b16 %v424
        %v494 = vunpack.c.l.b16 %v425
        %v495 = vpack.c.b16 %v494, %v493
        %v497 = vsel %vm443, %v495, 0
        %499 = vmatprep.subr.bf16.mxu0 0
        %500 = vmatpush1.bf16.msra.mxu0 %v439
        %501 = vmatprep.subr.bf16.mxu0 0
        %502 = vmatpush1.bf16.msra.mxu0 %v440
        %503 = vmatprep.subr.bf16.mxu0 0
        %504 = vmatpush1.bf16.msra.mxu0 0
        %505 = vmatprep.subr.bf16.mxu0 0
        %506 = vmatpush1.bf16.msra.mxu0 0
        %507 = vmatprep.subr.bf16.mxu0 0
        %508 = vmatpush1.bf16.msra.mxu0 0
        %509 = vmatprep.subr.bf16.mxu0 0
        %510 = vmatpush1.bf16.msra.mxu0 0
        %511 = vmatprep.subr.bf16.mxu0 0
        %512 = vmatpush1.bf16.msra.mxu0 0
        %513 = vmatprep.subr.bf16.mxu0 0
        %514 = vmatpush1.bf16.msra.mxu0 0
        %515 = vmatprep.subr.bf16.mxu0 0
        %516 = vmatpush1.bf16.msra.mxu0 0
        %517 = vmatprep.subr.bf16.mxu0 0
        %518 = vmatpush1.bf16.msra.mxu0 0
        %519 = vmatprep.subr.bf16.mxu0 0
        %520 = vmatpush1.bf16.msra.mxu0 0
        %521 = vmatprep.subr.bf16.mxu0 0
        %522 = vmatpush1.bf16.msra.mxu0 0
        %523 = vmatprep.subr.bf16.mxu0 0
        %524 = vmatpush1.bf16.msra.mxu0 0
        %525 = vmatprep.subr.bf16.mxu0 0
        %526 = vmatpush1.bf16.msra.mxu0 0
        %527 = vmatprep.subr.bf16.mxu0 0
        %528 = vmatpush1.bf16.msra.mxu0 0
        %529 = vmatprep.subr.bf16.mxu0 0
        %530 = vmatpush1.bf16.msra.mxu0 0
        %531 = vmatprep.mubr.bf16.mxu0 0
        %532 = vmatmul.mubr.bf16.gmra.mrb[0].mxu0 %v497
        %v533 = vpop.f32.mrb[0].mxu0
        %v534 = vadd.f32 %v489, %v533
        %v535 = vpop.f32.mrb[0].mxu0
        %v536 = vpop.f32.mrb[0].mxu0
        %v537 = vadd.f32 %v490, %v536
        %v538 = vpop.f32.mrb[0].mxu0
        %539 = vdwg.mxu0
        %v540 = vld [vmem:[%s5] sm:$0x1]
        %v542 = vlaneseq
        %v543 = vshrl.u32 %v542, 7
        %v544 = vsub.s32 0, %v543
        %v545 = vrot.slane %v540, %v544
        %v547 = vadd.f32 %v534, %v545
        %v548 = vadd.f32 %v537, %v545
        %v549 = vld [vmem:[%s399] sm:$0xff]
        %v550 = vld [vmem:[%s399 + $0x8] sm:$0xff]
        %v551 = vsub.f32 %v547, %v549
        %v552 = vsub.f32 %v548, %v550
        %v553 = vpack.c.bf16 %v552, %v551
        %v554 = vld [vmem:[%s4] sm:$0xf]
        %vm555 = vcmask 64512
        %v557 = vsel %vm555, %v553, 0
        %vm559 = vcmask 1043456
        %v561 = vsel %vm559, %v554, 0
        %563 = vmatprep.subr.bf16.mxu0 0
        %564 = vmatpush1.bf16.msra.mxu0 %v561
        %565 = vmatprep.subr.bf16.mxu0 0
        %566 = vmatpush1.bf16.msra.mxu0 0
        %567 = vmatprep.subr.bf16.mxu0 0
        %568 = vmatpush1.bf16.msra.mxu0 0
        %569 = vmatprep.subr.bf16.mxu0 0
        %570 = vmatpush1.bf16.msra.mxu0 0
        %571 = vmatprep.subr.bf16.mxu0 0
        %572 = vmatpush1.bf16.msra.mxu0 0
        %573 = vmatprep.subr.bf16.mxu0 0
        %574 = vmatpush1.bf16.msra.mxu0 0
        %575 = vmatprep.subr.bf16.mxu0 0
        %576 = vmatpush1.bf16.msra.mxu0 0
        %577 = vmatprep.subr.bf16.mxu0 0
        %578 = vmatpush1.bf16.msra.mxu0 0
        %579 = vmatprep.subr.bf16.mxu0 0
        %580 = vmatpush1.bf16.msra.mxu0 0
        %581 = vmatprep.subr.bf16.mxu0 0
        %582 = vmatpush1.bf16.msra.mxu0 0
        %583 = vmatprep.subr.bf16.mxu0 0
        %584 = vmatpush1.bf16.msra.mxu0 0
        %585 = vmatprep.subr.bf16.mxu0 0
        %586 = vmatpush1.bf16.msra.mxu0 0
        %587 = vmatprep.subr.bf16.mxu0 0
        %588 = vmatpush1.bf16.msra.mxu0 0
        %589 = vmatprep.subr.bf16.mxu0 0
        %590 = vmatpush1.bf16.msra.mxu0 0
        %591 = vmatprep.subr.bf16.mxu0 0
        %592 = vmatpush1.bf16.msra.mxu0 0
        %593 = vmatprep.subr.bf16.mxu0 0
        %594 = vmatpush1.bf16.msra.mxu0 0
        %595 = vmatprep.mubr.bf16.mxu0 0
        %596 = vmatmul.mubr.bf16.gmra.mrb[0].mxu0 %v557
        %v597 = vpop.f32.mrb[0].mxu0
        %v598 = vadd.f32 0.0, %v597
        %v599 = vpop.f32.mrb[0].mxu0
        %v600 = vpop.f32.mrb[0].mxu0
        %v601 = vadd.f32 0.0, %v600
        %v602 = vpop.f32.mrb[0].mxu0
        %603 = vdwg.mxu0
        %604 = vst.msk [vmem:[%s408] sm:$0xff] %vm555, %v551
        %605 = vst.msk [vmem:[%s408 + $0x8] sm:$0xff] %vm555, %v552
        %606 = vst.msk [vmem:[%s414] sm:$0xff] %vm555, %v489
        %607 = vst.msk [vmem:[%s414 + $0x8] sm:$0xff] %vm555, %v490
        %v608 = vunpack.c.l.bf16 %v418
        %v609 = vunpack.c.l.bf16 %v419
        %v610 = vmul.f32 %v598, %v598
        %v611 = vmul.f32 %v601, %v601
        %v612 = vsel %vm443, %v610, 0.0
        %v613 = vsel %vm443, %v611, 0.0
        %v614 = vadd.f32 %v612, %v613
        %615 = vadd.xlane.f32.xlu0 %v614
        %v616 = vpop.xlane.xlu0 %615
        %v617 = vrot.slane %v616, 4
        %v618 = vadd.f32 %v616, %v617
        %v619 = vrot.slane %v618, 2
        %v620 = vadd.f32 %v618, %v619
        %v621 = vrot.slane %v620, 1
        %v622 = vadd.f32 %v620, %v621
        %s623 = vtos %v622
        %s624 = smul.f32 %s417, %s417
        %v625 = vmul.f32 %v608, %v608
        %v626 = vmul.f32 %v609, %v609
        %v627 = vsel %vm443, %v625, 0.0
        %v628 = vsel %vm443, %v626, 0.0
        %v629 = vadd.f32 %v627, %v628
        %630 = vadd.xlane.f32.xlu0 %v629
        %v631 = vpop.xlane.xlu0 %630
        %v632 = vrot.slane %v631, 4
        %v633 = vadd.f32 %v631, %v632
        %v634 = vrot.slane %v633, 2
        %v635 = vadd.f32 %v633, %v634
        %v636 = vrot.slane %v635, 1
        %v637 = vadd.f32 %v635, %v636
        %s638 = vtos %v637
        %v639 = vstv %s638
        %v640 = vstv %s624
        %v641 = vmul.f32 %v640, %v639
        %v642 = vmul.f32 %v608, %v598
        %v643 = vmul.f32 %v609, %v601
        %v644 = vsel %vm443, %v642, 0.0
        %v645 = vsel %vm443, %v643, 0.0
        %v646 = vadd.f32 %v644, %v645
        %647 = vadd.xlane.f32.xlu0 %v646
        %v648 = vpop.xlane.xlu0 %647
        %v649 = vrot.slane %v648, 4
        %v650 = vadd.f32 %v648, %v649
        %v651 = vrot.slane %v650, 2
        %v652 = vadd.f32 %v650, %v651
        %v653 = vrot.slane %v652, 1
        %v654 = vadd.f32 %v652, %v653
        %s655 = vtos %v654
        %v656 = vstv %s655
        %v657 = vmul.f32 %v488, %v656
        %v658 = vlaneseq
        %v659 = vand.u32 %v658, 127
        %vm660 = vcmp.eq.s32.totalorder %v659, 0
        %v661 = vstv %s623
        %v662 = vsel %vm660, %v661, 0.0
        %vm663 = vcmp.eq.s32.totalorder %v659, 1
        %v664 = vsel %vm663, %v641, 0.0
        %v665 = vadd.f32 %v662, %v664
        %vm666 = vcmp.eq.s32.totalorder %v659, 2
        %v667 = vsel %vm666, %v657, 0.0
        %v668 = vadd.f32 %v665, %v667
        %669 = vst [vmem:[%s403] sm:$0x1] %v668
        %p670 = scmp.lt.s32.totalorder %s22, 1
        %s671 = scalar_select %p670, %s22, 1
        %s672 = scalar_lea.vmem %s7, %s671
        %s673 = smul.u32 2, %s22
        %p674 = scmp.lt.s32.totalorder %s673, 3
        %s675 = scalar_select %p674, %s673, 3
        %s676 = smul.addr %s675, 8
        %s677 = scalar_lea.vmem %s8, %s676
        %s678 = smul.u32 2, %s22
        %p679 = scmp.lt.s32.totalorder %s678, 3
        %s680 = scalar_select %p679, %s678, 3
        %s681 = smul.addr %s680, 8
        %s682 = scalar_lea.vmem %s9, %s681
        // Predicated region
        $region53: #{smart_loss.2} parent=47 // pred_check
          %p683 = pneg %p202
        $region54: #{smart_loss.2} parent=47 // pred_check_branch
          %685 = sbr.rel (%p683) target = $region56
        $region55: #{smart_loss.2} parent=47 // pred_region
          _
        $region56: #{smart_loss.2} parent=47 // pred_fallthru
          _
        // Predicated region
        $region57: #{smart_loss.2} parent=47 // pred_check
          %p686 = pneg %p228
        $region58: #{smart_loss.2} parent=47 // pred_check_branch
          %688 = sbr.rel (%p686) target = $region60
        $region59: #{smart_loss.2} parent=47 // pred_region
          %s689 = smul.u32 2, %s22
        $region60: #{smart_loss.2} parent=47 // pred_fallthru
          _
        // Predicated region
        $region61: #{smart_loss.2} parent=47 // pred_check
          %p690 = pneg %p254
        $region62: #{smart_loss.2} parent=47 // pred_check_branch
          %692 = sbr.rel (%p690) target = $region64
        $region63: #{smart_loss.2} parent=47 // pred_region
          %s693 = smul.u32 2, %s22
        $region64: #{smart_loss.2} parent=47 // pred_fallthru
          _
      $region48: #{smart_loss.2} parent=5 // pred_fallthru
        _
      %p694 = scmp.le.s32.totalorder 2, %s17
      // Predicated region
      $region65: #{smart_loss.2} parent=5 // pred_check
        %p695 = pneg %p694
      $region66: #{smart_loss.2} parent=5 // pred_check_branch
        %697 = sbr.rel (%p695) target = $region68
      $region67: #{smart_loss.2} parent=5 // pred_region
        %s698 = ssub.s32 %s17, 2
        // Predicated region
        $region69: #{smart_loss.2} parent=67 // pred_check
          %p699 = pneg %p208
        $region70: #{smart_loss.2} parent=67 // pred_check_branch
          %701 = sbr.rel (%p699) target = $region72
        $region71: #{smart_loss.2} parent=67 // pred_region
          %p702 = scmp.lt.s32.totalorder %s23, 1
          %s703 = scalar_select %p702, %s23, 1
          %s704 = scalar_lea.vmem %s7, %s703
        $region72: #{smart_loss.2} parent=67 // pred_fallthru
          _
        // Predicated region
        $region73: #{smart_loss.2} parent=67 // pred_check
          %p705 = pneg %p234
        $region74: #{smart_loss.2} parent=67 // pred_check_branch
          %707 = sbr.rel (%p705) target = $region76
        $region75: #{smart_loss.2} parent=67 // pred_region
          %s708 = smul.u32 2, %s23
          %p709 = scmp.lt.s32.totalorder %s708, 3
          %s710 = scalar_select %p709, %s708, 3
          %s711 = smul.addr %s710, 8
          %s712 = scalar_lea.vmem %s8, %s711
        $region76: #{smart_loss.2} parent=67 // pred_fallthru
          _
        // Predicated region
        $region77: #{smart_loss.2} parent=67 // pred_check
          %p713 = pneg %p260
        $region78: #{smart_loss.2} parent=67 // pred_check_branch
          %715 = sbr.rel (%p713) target = $region80
        $region79: #{smart_loss.2} parent=67 // pred_region
          %s716 = smul.u32 2, %s23
          %p717 = scmp.lt.s32.totalorder %s716, 3
          %s718 = scalar_select %p717, %s716, 3
          %s719 = smul.addr %s718, 8
          %s720 = scalar_lea.vmem %s9, %s719
        $region80: #{smart_loss.2} parent=67 // pred_fallthru
          _
      $region68: #{smart_loss.2} parent=5 // pred_fallthru
        _
    $region6: #{smart_loss.2} parent=1 // loop_footer
      %s21 = sadd.s32 1, %s17
    $region7: #{smart_loss.2} parent=1 // loop_footer_branch
      %16 = sbr.rel target = $region3
    $region8: #{smart_loss.2} parent=1 // loop_exit
      _
    %721 = vsyncpa [#allocation3], 1
    %s722 = scalar_lea.sflag [#allocation3], 1
    %723 = vsyncpa %s722, 1

</llo_original>
